<compile_context>
chip_gen: v6e
topology: v6e:2x2x1
jax: 0.10.0
libtpu: 0.0.40
codegen_flags: <defaults>
</compile_context>

<pallas_src>
import numpy as np
import jax
import jax.numpy as jnp
from jax import lax
from jax.experimental import pallas as pl
from jax.experimental.pallas import tpu as pltpu

EPS = 1e-5  # PyTorch InstanceNorm2d default (affine=False, biased variance)


def _round_up(x, m):
    return ((x + m - 1) // m) * m


# ---------------------------------------------------------------------------
# One-time probe: is pltpu.roll available, and what is its sign convention?
#   +1 : pltpu.roll(x, s) == jnp.roll(x, s)  (positive s moves data to higher indices)
#   -1 : opposite convention
#    0 : unavailable -> fall back to slices / concat rotates (still correct)
# ---------------------------------------------------------------------------
_ROLL_MODE = None


def _probe_pltpu_roll():
    global _ROLL_MODE
    if _ROLL_MODE is not None:
        return _ROLL_MODE
    try:
        def _k(o_ref):
            x = lax.broadcasted_iota(jnp.float32, (8, 256), 1).astype(jnp.bfloat16)
            o_ref[...] = pltpu.roll(x, 1, 1).astype(jnp.float32)

        r = pl.pallas_call(_k, out_shape=jax.ShapeDtypeStruct((8, 256), jnp.float32))()
        v = float(jax.device_get(r)[0, 0])
        _ROLL_MODE = 1 if v == 255.0 else (-1 if v == 1.0 else 0)
    except Exception:
        _ROLL_MODE = 0
    return _ROLL_MODE


# ---------------------------------------------------------------------------
# Constant masks (stored as f32, compared against 0 in-kernel to get booleans).
# ---------------------------------------------------------------------------
def _build_masks(H, W, HWp, Lp):
    """(5, Lp) mask bundle.

    row 0: valid conv-output columns  (j < H*Wp and j % Wp < W)
    row 1: left   border columns of the padded grid (pc == 0)
    row 2: right  border columns of the padded grid (pc == Wp-1)
    row 3: top    padded row (pr == 0)
    row 4: bottom padded row (pr == Hp-1)
    """
    Hp, Wp = H + 2, W + 2
    j = np.arange(Lp)
    pr, pc = j // Wp, j % Wp
    in_grid = j < Hp * Wp
    m = np.zeros((5, Lp), np.float32)
    m[0, :HWp] = ((j[:HWp] % Wp) < W) & (j[:HWp] < H * Wp)
    m[1] = (pc == 0) & in_grid
    m[2] = (pc == Wp - 1) & in_grid
    m[3] = pr == 0
    m[4] = (pr == Hp - 1) & in_grid
    return m


# ---------------------------------------------------------------------------
# Fused kernel
# ---------------------------------------------------------------------------
def _make_kernel(H, W, C, HpWp, HWp, Lp, mxu_dtype, roll_mode):
    Hp, Wp = H + 2, W + 2
    inv_hw = 1.0 / float(H * W)

    def left_roll(x, k):
        """y[..., j] = x[..., (j + k) % L] for a static k."""
        L = x.shape[-1]
        k = int(k) % L
        if k == 0:
            return x
        if roll_mode == 1:        # pltpu.roll matches jnp.roll -> right-roll by L-k
            return pltpu.roll(x, L - k, 1)
        if roll_mode == -1:       # pltpu.roll already rolls toward lower indices
            return pltpu.roll(x, k, 1)
        return jnp.concatenate([x[..., k:], x[..., :k]], axis=-1)

    def tap(src, off):
        """src[:, off:off+HWp] via an XLU lane rotation + aligned slice when possible."""
        if off == 0:
            return src[:, :HWp]
        if roll_mode == 0:
            return src[:, off:off + HWp]
        return left_roll(src, off)[:, :HWp]

    def conv3x3(src_mx, w_ref):
        # src_mx: (C, Lp) flat padded rows (row width Wp) in the MXU dtype.
        # out:    (C, HWp) f32; column j = r*Wp + c, columns with c >= W are junk.
        acc = jnp.dot(w_ref[0], tap(src_mx, 0), preferred_element_type=jnp.float32)
        for kh in range(3):
            for kw in range(3):
                if kh == 0 and kw == 0:
                    continue
                acc = acc + jnp.dot(w_ref[3 * kh + kw], tap(src_mx, kh * Wp + kw),
                                    preferred_element_type=jnp.float32)
        return acc

    def inst_norm(y, valid):
        # One masked pass + sum / sum-of-squares; biased variance over H*W valid cols.
        y = jnp.where(valid, y, 0.0)
        mean = jnp.sum(y, axis=1, keepdims=True) * inv_hw
        ex2 = jnp.sum(y * y, axis=1, keepdims=True) * inv_hw
        var = jnp.maximum(ex2 - mean * mean, 0.0)
        return (y - mean) * lax.rsqrt(var + EPS)

    def kernel(xp_ref, w1_ref, w2_ref, masks_ref, o_ref):
        xp = xp_ref[0]                                   # (C, Hp*Wp), input dtype
        valid = masks_ref[0:1, :HWp] != 0.0
        m_l = masks_ref[1:2, :] != 0.0
        m_r = masks_ref[2:3, :] != 0.0
        m_t = masks_ref[3:4, :] != 0.0
        m_b = masks_ref[4:5, :] != 0.0

        # Append tail columns in-register (wrapper no longer re-pads in HBM).
        src = jnp.concatenate(
            [xp, jnp.zeros((C, Lp - HpWp), xp.dtype)], axis=1)            # (C, Lp) f32
        src_mx = src.astype(mxu_dtype)                                    # one cast pass

        # ---- conv1 + InstanceNorm + ReLU (bias cancelled by the mean subtraction)
        h = jnp.maximum(inst_norm(conv3x3(src_mx, w1_ref), valid), 0.0)   # (C, HWp) f32

        # ---- rebuild ReflectionPad2d(1) of h in the same flat layout, in-register.
        # Valid h values placed at lane offset Wp+1 land on their interior padded cell;
        # junk columns land only on border cells / past the grid (overwritten / unread).
        hp = jnp.concatenate(
            [jnp.zeros((C, Wp + 1), jnp.float32), h,
             jnp.zeros((C, Lp - (Wp + 1) - HWp), jnp.float32)], axis=1)   # (C, Lp)
        hp = jnp.where(m_l, left_roll(hp, 2), hp)             # col 0    <- col 2
        hp = jnp.where(m_r, left_roll(hp, Lp - 2), hp)        # col Wp-1 <- col Wp-3
        hp = jnp.where(m_t, left_roll(hp, 2 * Wp), hp)        # row 0    <- row 2
        hp = jnp.where(m_b, left_roll(hp, Lp - 2 * Wp), hp)   # row Hp-1 <- row Hp-3

        # ---- conv2 + InstanceNorm + residual (centre-tap slice of src == original x)
        y2 = inst_norm(conv3x3(hp.astype(mxu_dtype), w2_ref), valid)
        res = tap(src, Wp + 1).astype(jnp.float32)
        o_ref[0] = (res + y2).astype(o_ref.dtype)

    return kernel


# ---------------------------------------------------------------------------
# Public wrapper (NCHW in / NCHW out, PyTorch OIHW conv weights)
# ---------------------------------------------------------------------------
def residual_block(x_nchw, w1, b1=None, w2=None, b2=None, *, mxu_dtype=jnp.bfloat16):
    """Forward pass of ResidualBlock. x: (N, C, H, W); weights in PyTorch OIHW layout.

    b1/b2 are accepted for API parity but unused: with affine=False InstanceNorm the
    per-channel conv bias is exactly cancelled by the per-(n, c) mean subtraction.
    mxu_dtype: dtype fed to the MXU (accumulation / normalisation stay f32).
    """
    # TODO(synk): Dropout omitted — gen_residual_dropout = 0.0 (layer absent in the Sequential).
    N, C, H, W = x_nchw.shape
    assert H >= 2 and W >= 2, "ReflectionPad2d(1) requires H, W >= 2"
    Hp, Wp = H + 2, W + 2
    HpWp = Hp * Wp
    HWp = _round_up(H * Wp, 128)                        # lane-dense conv-output width
    Lp = _round_up(max(HpWp, HWp + 2 * Wp + 2), 128)    # flat padded width + tap slack

    # ReflectionPad2d(1) of the input (one HBM pass); the row-flatten reshape is free.
    # TODO(synk): fold this pad into the kernel too (same roll+where trick used for h).
    xp_flat = jnp.pad(x_nchw, ((0, 0), (0, 0), (1, 1), (1, 1)),
                      mode="reflect").reshape(N, C, HpWp)

    # PyTorch OIHW -> (9, C_out, C_in): tap k = 3*kh + kw multiplies from the left.
    w1m = jnp.transpose(w1, (2, 3, 0, 1)).reshape(9, C, C).astype(mxu_dtype)
    w2m = jnp.transpose(w2, (2, 3, 0, 1)).reshape(9, C, C).astype(mxu_dtype)

    masks = jnp.asarray(_build_masks(H, W, HWp, Lp))
    roll_mode = _probe_pltpu_roll()

    out_flat = pl.pallas_call(
        _make_kernel(H, W, C, HpWp, HWp, Lp, mxu_dtype, roll_mode),
        out_shape=jax.ShapeDtypeStruct((N, C, HWp), x_nchw.dtype),
        grid_spec=pltpu.PrefetchScalarGridSpec(
            num_scalar_prefetch=0,
            grid=(N,),
            in_specs=[
                pl.BlockSpec((1, C, HpWp), lambda n: (n, 0, 0)),  # padded image (per n)
                pl.BlockSpec((9, C, C), lambda n: (0, 0, 0)),     # conv1 weights (resident)
                pl.BlockSpec((9, C, C), lambda n: (0, 0, 0)),     # conv2 weights (resident)
                pl.BlockSpec((5, Lp), lambda n: (0, 0)),          # constant masks (resident)
            ],
            out_specs=pl.BlockSpec((1, C, HWp), lambda n: (n, 0, 0)),
        ),
        compiler_params=pltpu.CompilerParams(
            dimension_semantics=("parallel",),   # shard batch elements across TCs (v7x)
            vmem_limit_bytes=64 * 1024 * 1024,   # prod shape (C=256, 64x64) > 32 MiB default
        ),
    )(xp_flat, w1m, w2m, masks)

    # Drop the junk columns per row and return NCHW.
    # TODO(synk): a fused downstream consumer could take the lane-dense junk-column
    #             layout directly and skip this HBM re-copy.
    return out_flat[:, :, :H * Wp].reshape(N, C, H, Wp)[:, :, :, :W]


# ---------------------------------------------------------------------------
# Pure-JAX reference (f32, precision=HIGHEST; includes the conv biases)
# ---------------------------------------------------------------------------
def _ref_forward(x, w1, b1, w2, b2):
    def conv(h, w, b):
        hp = jnp.pad(h, ((0, 0), (0, 0), (1, 1), (1, 1)), mode="reflect")
        y = lax.conv_general_dilated(
            hp, w, (1, 1), "VALID",
            dimension_numbers=("NCHW", "OIHW", "NCHW"),
            precision=lax.Precision.HIGHEST)
        return y + b[None, :, None, None]

    def inorm(y):
        m = jnp.mean(y, axis=(2, 3), keepdims=True)
        v = jnp.mean((y - m) ** 2, axis=(2, 3), keepdims=True)
        return (y - m) / jnp.sqrt(v + EPS)

    h = jnp.maximum(inorm(conv(x, w1, b1)), 0.0)
    return x + inorm(conv(h, w2, b2))


# ---------------------------------------------------------------------------
# Main
# ---------------------------------------------------------------------------
if __name__ == "__main__":
    N, C, H, W = 2, 4, 16, 16
    key = jax.random.PRNGKey(0)
    kx, k1, k2, k3, k4 = jax.random.split(key, 5)

    x = jax.random.normal(kx, (N, C, H, W), dtype=jnp.float32)
    # Deterministic synthetic parameters (Conv2d(dim, dim, 3) x 2, with bias).
    w1 = jax.random.normal(k1, (C, C, 3, 3), dtype=jnp.float32) * 0.1
    b1 = jax.random.normal(k2, (C,), dtype=jnp.float32) * 0.1
    w2 = jax.random.normal(k3, (C, C, 3, 3), dtype=jnp.float32) * 0.1
    b2 = jax.random.normal(k4, (C,), dtype=jnp.float32) * 0.1

    out = jax.block_until_ready(residual_block(x, w1, b1, w2, b2))  # bf16 MXU perf path
    ref = jax.block_until_ready(_ref_forward(x, w1, b1, w2, b2))

    assert out.shape == (N, C, H, W)
    max_err = float(jnp.max(jnp.abs(out - ref)))
    # Structural bugs (wrong pad / roll / mask) give O(1) errors; legitimate bf16
    # operand quantisation (f32 accumulation everywhere) stays well under this bound.
    assert max_err < 1e-1, f"max abs err {max_err}"
    print("KERNEL_OK")
</pallas_src>

<mosaic_0001>
module attributes {stable_mosaic.version = 11 : i64} {
  func.func @kernel(%arg0: i32, %arg1: memref<1x4x324xf32, #tpu.memory_space<vmem>>, %arg2: memref<9x4x4xbf16, #tpu.memory_space<vmem>>, %arg3: memref<9x4x4xbf16, #tpu.memory_space<vmem>>, %arg4: memref<5x512xf32, #tpu.memory_space<vmem>>, %arg5: memref<1x4x384xf32, #tpu.memory_space<vmem>>) attributes {dimension_semantics = [#tpu.dimension_semantics<parallel>], iteration_bounds = array<i64: 2>, scalar_prefetch = 0 : i64, scratch_operands = 0 : i64, tpu.core_type = #tpu.core_type<tc>, window_params = [{transform_indices = @transform_0, window_bounds = array<i64: 1, 4, 324>}, {pipeline_mode = #tpu.pipeline_mode<synchronous>, transform_indices = @transform_1, window_bounds = array<i64: 9, 4, 4>}, {pipeline_mode = #tpu.pipeline_mode<synchronous>, transform_indices = @transform_2, window_bounds = array<i64: 9, 4, 4>}, {pipeline_mode = #tpu.pipeline_mode<synchronous>, transform_indices = @transform_3, window_bounds = array<i64: 5, 512>}, {transform_indices = @transform_4, window_bounds = array<i64: 1, 4, 384>}]} {
    %c0 = arith.constant 0 : index
    %c0_0 = arith.constant 0 : index
    %c0_1 = arith.constant 0 : index
    %0 = vector.load %arg1[%c0, %c0_0, %c0_1] : memref<1x4x324xf32, #tpu.memory_space<vmem>>, vector<1x4x324xf32>
    %1 = vector.shape_cast %0 : vector<1x4x324xf32> to vector<4x324xf32>
    %c0_2 = arith.constant 0 : index
    %c0_3 = arith.constant 0 : index
    %2 = vector.load %arg4[%c0_2, %c0_3] : memref<5x512xf32, #tpu.memory_space<vmem>>, vector<1x384xf32>
    %cst = arith.constant 0.000000e+00 : f32
    %3 = vector.broadcast %cst : f32 to vector<1x384xf32>
    %4 = arith.cmpf one, %2, %3 : vector<1x384xf32>
    %c1 = arith.constant 1 : index
    %c0_4 = arith.constant 0 : index
    %5 = vector.load %arg4[%c1, %c0_4] : memref<5x512xf32, #tpu.memory_space<vmem>>, vector<1x512xf32>
    %cst_5 = arith.constant 0.000000e+00 : f32
    %6 = vector.broadcast %cst_5 : f32 to vector<1x512xf32>
    %7 = arith.cmpf one, %5, %6 : vector<1x512xf32>
    %c2 = arith.constant 2 : index
    %c0_6 = arith.constant 0 : index
    %8 = vector.load %arg4[%c2, %c0_6] : memref<5x512xf32, #tpu.memory_space<vmem>>, vector<1x512xf32>
    %cst_7 = arith.constant 0.000000e+00 : f32
    %9 = vector.broadcast %cst_7 : f32 to vector<1x512xf32>
    %10 = arith.cmpf one, %8, %9 : vector<1x512xf32>
    %c3 = arith.constant 3 : index
    %c0_8 = arith.constant 0 : index
    %11 = vector.load %arg4[%c3, %c0_8] : memref<5x512xf32, #tpu.memory_space<vmem>>, vector<1x512xf32>
    %cst_9 = arith.constant 0.000000e+00 : f32
    %12 = vector.broadcast %cst_9 : f32 to vector<1x512xf32>
    %13 = arith.cmpf one, %11, %12 : vector<1x512xf32>
    %c4 = arith.constant 4 : index
    %c0_10 = arith.constant 0 : index
    %14 = vector.load %arg4[%c4, %c0_10] : memref<5x512xf32, #tpu.memory_space<vmem>>, vector<1x512xf32>
    %cst_11 = arith.constant 0.000000e+00 : f32
    %15 = vector.broadcast %cst_11 : f32 to vector<1x512xf32>
    %16 = arith.cmpf one, %14, %15 : vector<1x512xf32>
    %cst_12 = arith.constant 0.000000e+00 : f32
    %17 = vector.broadcast %cst_12 : f32 to vector<4x188xf32>
    %18 = tpu.concatenate %1, %17 in 1 : vector<4x324xf32>, vector<4x188xf32> -> vector<4x512xf32>
    %19 = arith.truncf %18 : vector<4x512xf32> to vector<4x512xbf16>
    %c0_13 = arith.constant 0 : index
    %c0_14 = arith.constant 0 : index
    %c0_15 = arith.constant 0 : index
    %20 = vector.load %arg2[%c0_13, %c0_14, %c0_15] : memref<9x4x4xbf16, #tpu.memory_space<vmem>>, vector<1x4x4xbf16>
    %21 = vector.shape_cast %20 : vector<1x4x4xbf16> to vector<4x4xbf16>
    %22 = vector.extract_strided_slice %19 {offsets = [0, 0], sizes = [4, 384], strides = [1, 1]} : vector<4x512xbf16> to vector<4x384xbf16>
    %cst_16 = arith.constant dense<0.000000e+00> : vector<4x384xf32>
    %23 = tpu.matmul %21, %22, %cst_16 {dimension_numbers = #tpu.dot_dimension_numbers<[1], [0], [0], [1], [0, 0, 1, 1], [], []>} : vector<4x4xbf16>, vector<4x384xbf16>, vector<4x384xf32> -> vector<4x384xf32>
    %c1_17 = arith.constant 1 : index
    %c0_18 = arith.constant 0 : index
    %c0_19 = arith.constant 0 : index
    %24 = vector.load %arg2[%c1_17, %c0_18, %c0_19] : memref<9x4x4xbf16, #tpu.memory_space<vmem>>, vector<1x4x4xbf16>
    %25 = vector.shape_cast %24 : vector<1x4x4xbf16> to vector<4x4xbf16>
    %26 = vector.extract_strided_slice %19 {offsets = [0, 1], sizes = [4, 384], strides = [1, 1]} : vector<4x512xbf16> to vector<4x384xbf16>
    %cst_20 = arith.constant dense<0.000000e+00> : vector<4x384xf32>
    %27 = tpu.matmul %25, %26, %cst_20 {dimension_numbers = #tpu.dot_dimension_numbers<[1], [0], [0], [1], [0, 0, 1, 1], [], []>} : vector<4x4xbf16>, vector<4x384xbf16>, vector<4x384xf32> -> vector<4x384xf32>
    %28 = arith.addf %23, %27 : vector<4x384xf32>
    %c2_21 = arith.constant 2 : index
    %c0_22 = arith.constant 0 : index
    %c0_23 = arith.constant 0 : index
    %29 = vector.load %arg2[%c2_21, %c0_22, %c0_23] : memref<9x4x4xbf16, #tpu.memory_space<vmem>>, vector<1x4x4xbf16>
    %30 = vector.shape_cast %29 : vector<1x4x4xbf16> to vector<4x4xbf16>
    %31 = vector.extract_strided_slice %19 {offsets = [0, 2], sizes = [4, 384], strides = [1, 1]} : vector<4x512xbf16> to vector<4x384xbf16>
    %cst_24 = arith.constant dense<0.000000e+00> : vector<4x384xf32>
    %32 = tpu.matmul %30, %31, %cst_24 {dimension_numbers = #tpu.dot_dimension_numbers<[1], [0], [0], [1], [0, 0, 1, 1], [], []>} : vector<4x4xbf16>, vector<4x384xbf16>, vector<4x384xf32> -> vector<4x384xf32>
    %33 = arith.addf %28, %32 : vector<4x384xf32>
    %c3_25 = arith.constant 3 : index
    %c0_26 = arith.constant 0 : index
    %c0_27 = arith.constant 0 : index
    %34 = vector.load %arg2[%c3_25, %c0_26, %c0_27] : memref<9x4x4xbf16, #tpu.memory_space<vmem>>, vector<1x4x4xbf16>
    %35 = vector.shape_cast %34 : vector<1x4x4xbf16> to vector<4x4xbf16>
    %36 = vector.extract_strided_slice %19 {offsets = [0, 18], sizes = [4, 384], strides = [1, 1]} : vector<4x512xbf16> to vector<4x384xbf16>
    %cst_28 = arith.constant dense<0.000000e+00> : vector<4x384xf32>
    %37 = tpu.matmul %35, %36, %cst_28 {dimension_numbers = #tpu.dot_dimension_numbers<[1], [0], [0], [1], [0, 0, 1, 1], [], []>} : vector<4x4xbf16>, vector<4x384xbf16>, vector<4x384xf32> -> vector<4x384xf32>
    %38 = arith.addf %33, %37 : vector<4x384xf32>
    %c4_29 = arith.constant 4 : index
    %c0_30 = arith.constant 0 : index
    %c0_31 = arith.constant 0 : index
    %39 = vector.load %arg2[%c4_29, %c0_30, %c0_31] : memref<9x4x4xbf16, #tpu.memory_space<vmem>>, vector<1x4x4xbf16>
    %40 = vector.shape_cast %39 : vector<1x4x4xbf16> to vector<4x4xbf16>
    %41 = vector.extract_strided_slice %19 {offsets = [0, 19], sizes = [4, 384], strides = [1, 1]} : vector<4x512xbf16> to vector<4x384xbf16>
    %cst_32 = arith.constant dense<0.000000e+00> : vector<4x384xf32>
    %42 = tpu.matmul %40, %41, %cst_32 {dimension_numbers = #tpu.dot_dimension_numbers<[1], [0], [0], [1], [0, 0, 1, 1], [], []>} : vector<4x4xbf16>, vector<4x384xbf16>, vector<4x384xf32> -> vector<4x384xf32>
    %43 = arith.addf %38, %42 : vector<4x384xf32>
    %c5 = arith.constant 5 : index
    %c0_33 = arith.constant 0 : index
    %c0_34 = arith.constant 0 : index
    %44 = vector.load %arg2[%c5, %c0_33, %c0_34] : memref<9x4x4xbf16, #tpu.memory_space<vmem>>, vector<1x4x4xbf16>
    %45 = vector.shape_cast %44 : vector<1x4x4xbf16> to vector<4x4xbf16>
    %46 = vector.extract_strided_slice %19 {offsets = [0, 20], sizes = [4, 384], strides = [1, 1]} : vector<4x512xbf16> to vector<4x384xbf16>
    %cst_35 = arith.constant dense<0.000000e+00> : vector<4x384xf32>
    %47 = tpu.matmul %45, %46, %cst_35 {dimension_numbers = #tpu.dot_dimension_numbers<[1], [0], [0], [1], [0, 0, 1, 1], [], []>} : vector<4x4xbf16>, vector<4x384xbf16>, vector<4x384xf32> -> vector<4x384xf32>
    %48 = arith.addf %43, %47 : vector<4x384xf32>
    %c6 = arith.constant 6 : index
    %c0_36 = arith.constant 0 : index
    %c0_37 = arith.constant 0 : index
    %49 = vector.load %arg2[%c6, %c0_36, %c0_37] : memref<9x4x4xbf16, #tpu.memory_space<vmem>>, vector<1x4x4xbf16>
    %50 = vector.shape_cast %49 : vector<1x4x4xbf16> to vector<4x4xbf16>
    %51 = vector.extract_strided_slice %19 {offsets = [0, 36], sizes = [4, 384], strides = [1, 1]} : vector<4x512xbf16> to vector<4x384xbf16>
    %cst_38 = arith.constant dense<0.000000e+00> : vector<4x384xf32>
    %52 = tpu.matmul %50, %51, %cst_38 {dimension_numbers = #tpu.dot_dimension_numbers<[1], [0], [0], [1], [0, 0, 1, 1], [], []>} : vector<4x4xbf16>, vector<4x384xbf16>, vector<4x384xf32> -> vector<4x384xf32>
    %53 = arith.addf %48, %52 : vector<4x384xf32>
    %c7 = arith.constant 7 : index
    %c0_39 = arith.constant 0 : index
    %c0_40 = arith.constant 0 : index
    %54 = vector.load %arg2[%c7, %c0_39, %c0_40] : memref<9x4x4xbf16, #tpu.memory_space<vmem>>, vector<1x4x4xbf16>
    %55 = vector.shape_cast %54 : vector<1x4x4xbf16> to vector<4x4xbf16>
    %56 = vector.extract_strided_slice %19 {offsets = [0, 37], sizes = [4, 384], strides = [1, 1]} : vector<4x512xbf16> to vector<4x384xbf16>
    %cst_41 = arith.constant dense<0.000000e+00> : vector<4x384xf32>
    %57 = tpu.matmul %55, %56, %cst_41 {dimension_numbers = #tpu.dot_dimension_numbers<[1], [0], [0], [1], [0, 0, 1, 1], [], []>} : vector<4x4xbf16>, vector<4x384xbf16>, vector<4x384xf32> -> vector<4x384xf32>
    %58 = arith.addf %53, %57 : vector<4x384xf32>
    %c8 = arith.constant 8 : index
    %c0_42 = arith.constant 0 : index
    %c0_43 = arith.constant 0 : index
    %59 = vector.load %arg2[%c8, %c0_42, %c0_43] : memref<9x4x4xbf16, #tpu.memory_space<vmem>>, vector<1x4x4xbf16>
    %60 = vector.shape_cast %59 : vector<1x4x4xbf16> to vector<4x4xbf16>
    %61 = vector.extract_strided_slice %19 {offsets = [0, 38], sizes = [4, 384], strides = [1, 1]} : vector<4x512xbf16> to vector<4x384xbf16>
    %cst_44 = arith.constant dense<0.000000e+00> : vector<4x384xf32>
    %62 = tpu.matmul %60, %61, %cst_44 {dimension_numbers = #tpu.dot_dimension_numbers<[1], [0], [0], [1], [0, 0, 1, 1], [], []>} : vector<4x4xbf16>, vector<4x384xbf16>, vector<4x384xf32> -> vector<4x384xf32>
    %63 = arith.addf %58, %62 : vector<4x384xf32>
    %cst_45 = arith.constant 0.000000e+00 : f32
    %64 = vector.shape_cast %4 : vector<1x384xi1> to vector<1x384xi1>
    %65 = vector.broadcast %64 : vector<1x384xi1> to vector<4x384xi1>
    %66 = vector.broadcast %cst_45 : f32 to vector<4x384xf32>
    %67 = arith.select %65, %63, %66 : vector<4x384xi1>, vector<4x384xf32>
    %cst_46 = arith.constant dense<0.000000e+00> : vector<4xf32>
    %68 = vector.multi_reduction <add>, %67, %cst_46 [1] : vector<4x384xf32> to vector<4xf32>
    %69 = vector.shape_cast %68 : vector<4xf32> to vector<4x1xf32>
    %cst_47 = arith.constant 3.906250e-03 : f32
    %70 = vector.broadcast %cst_47 : f32 to vector<4x1xf32>
    %71 = arith.mulf %69, %70 : vector<4x1xf32>
    %72 = arith.mulf %67, %67 : vector<4x384xf32>
    %cst_48 = arith.constant dense<0.000000e+00> : vector<4xf32>
    %73 = vector.multi_reduction <add>, %72, %cst_48 [1] : vector<4x384xf32> to vector<4xf32>
    %74 = vector.shape_cast %73 : vector<4xf32> to vector<4x1xf32>
    %cst_49 = arith.constant 3.906250e-03 : f32
    %75 = vector.broadcast %cst_49 : f32 to vector<4x1xf32>
    %76 = arith.mulf %74, %75 : vector<4x1xf32>
    %77 = arith.mulf %71, %71 : vector<4x1xf32>
    %78 = arith.subf %76, %77 : vector<4x1xf32>
    %cst_50 = arith.constant 0.000000e+00 : f32
    %79 = vector.broadcast %cst_50 : f32 to vector<4x1xf32>
    %80 = arith.maximumf %78, %79 : vector<4x1xf32>
    %81 = vector.broadcast %71 : vector<4x1xf32> to vector<4x384xf32>
    %82 = arith.subf %67, %81 : vector<4x384xf32>
    %cst_51 = arith.constant 9.99999974E-6 : f32
    %83 = vector.broadcast %cst_51 : f32 to vector<4x1xf32>
    %84 = arith.addf %80, %83 : vector<4x1xf32>
    %85 = math.rsqrt %84 : vector<4x1xf32>
    %86 = vector.broadcast %85 : vector<4x1xf32> to vector<4x384xf32>
    %87 = arith.mulf %82, %86 : vector<4x384xf32>
    %cst_52 = arith.constant 0.000000e+00 : f32
    %88 = vector.broadcast %cst_52 : f32 to vector<4x384xf32>
    %89 = arith.maximumf %87, %88 : vector<4x384xf32>
    %cst_53 = arith.constant 0.000000e+00 : f32
    %90 = vector.broadcast %cst_53 : f32 to vector<4x19xf32>
    %cst_54 = arith.constant 0.000000e+00 : f32
    %91 = vector.broadcast %cst_54 : f32 to vector<4x109xf32>
    %92 = tpu.concatenate %90, %89, %91 in 1 : vector<4x19xf32>, vector<4x384xf32>, vector<4x109xf32> -> vector<4x512xf32>
    %93 = vector.extract_strided_slice %92 {offsets = [0, 2], sizes = [4, 510], strides = [1, 1]} : vector<4x512xf32> to vector<4x510xf32>
    %94 = vector.extract_strided_slice %92 {offsets = [0, 0], sizes = [4, 2], strides = [1, 1]} : vector<4x512xf32> to vector<4x2xf32>
    %95 = tpu.concatenate %93, %94 in 1 : vector<4x510xf32>, vector<4x2xf32> -> vector<4x512xf32>
    %96 = vector.shape_cast %7 : vector<1x512xi1> to vector<1x512xi1>
    %97 = vector.broadcast %96 : vector<1x512xi1> to vector<4x512xi1>
    %98 = arith.select %97, %95, %92 : vector<4x512xi1>, vector<4x512xf32>
    %99 = vector.extract_strided_slice %98 {offsets = [0, 510], sizes = [4, 2], strides = [1, 1]} : vector<4x512xf32> to vector<4x2xf32>
    %100 = vector.extract_strided_slice %98 {offsets = [0, 0], sizes = [4, 510], strides = [1, 1]} : vector<4x512xf32> to vector<4x510xf32>
    %101 = tpu.concatenate %99, %100 in 1 : vector<4x2xf32>, vector<4x510xf32> -> vector<4x512xf32>
    %102 = vector.shape_cast %10 : vector<1x512xi1> to vector<1x512xi1>
    %103 = vector.broadcast %102 : vector<1x512xi1> to vector<4x512xi1>
    %104 = arith.select %103, %101, %98 : vector<4x512xi1>, vector<4x512xf32>
    %105 = vector.extract_strided_slice %104 {offsets = [0, 36], sizes = [4, 476], strides = [1, 1]} : vector<4x512xf32> to vector<4x476xf32>
    %106 = vector.extract_strided_slice %104 {offsets = [0, 0], sizes = [4, 36], strides = [1, 1]} : vector<4x512xf32> to vector<4x36xf32>
    %107 = tpu.concatenate %105, %106 in 1 : vector<4x476xf32>, vector<4x36xf32> -> vector<4x512xf32>
    %108 = vector.shape_cast %13 : vector<1x512xi1> to vector<1x512xi1>
    %109 = vector.broadcast %108 : vector<1x512xi1> to vector<4x512xi1>
    %110 = arith.select %109, %107, %104 : vector<4x512xi1>, vector<4x512xf32>
    %111 = vector.extract_strided_slice %110 {offsets = [0, 476], sizes = [4, 36], strides = [1, 1]} : vector<4x512xf32> to vector<4x36xf32>
    %112 = vector.extract_strided_slice %110 {offsets = [0, 0], sizes = [4, 476], strides = [1, 1]} : vector<4x512xf32> to vector<4x476xf32>
    %113 = tpu.concatenate %111, %112 in 1 : vector<4x36xf32>, vector<4x476xf32> -> vector<4x512xf32>
    %114 = vector.shape_cast %16 : vector<1x512xi1> to vector<1x512xi1>
    %115 = vector.broadcast %114 : vector<1x512xi1> to vector<4x512xi1>
    %116 = arith.select %115, %113, %110 : vector<4x512xi1>, vector<4x512xf32>
    %117 = arith.truncf %116 : vector<4x512xf32> to vector<4x512xbf16>
    %c0_55 = arith.constant 0 : index
    %c0_56 = arith.constant 0 : index
    %c0_57 = arith.constant 0 : index
    %118 = vector.load %arg3[%c0_55, %c0_56, %c0_57] : memref<9x4x4xbf16, #tpu.memory_space<vmem>>, vector<1x4x4xbf16>
    %119 = vector.shape_cast %118 : vector<1x4x4xbf16> to vector<4x4xbf16>
    %120 = vector.extract_strided_slice %117 {offsets = [0, 0], sizes = [4, 384], strides = [1, 1]} : vector<4x512xbf16> to vector<4x384xbf16>
    %cst_58 = arith.constant dense<0.000000e+00> : vector<4x384xf32>
    %121 = tpu.matmul %119, %120, %cst_58 {dimension_numbers = #tpu.dot_dimension_numbers<[1], [0], [0], [1], [0, 0, 1, 1], [], []>} : vector<4x4xbf16>, vector<4x384xbf16>, vector<4x384xf32> -> vector<4x384xf32>
    %c1_59 = arith.constant 1 : index
    %c0_60 = arith.constant 0 : index
    %c0_61 = arith.constant 0 : index
    %122 = vector.load %arg3[%c1_59, %c0_60, %c0_61] : memref<9x4x4xbf16, #tpu.memory_space<vmem>>, vector<1x4x4xbf16>
    %123 = vector.shape_cast %122 : vector<1x4x4xbf16> to vector<4x4xbf16>
    %124 = vector.extract_strided_slice %117 {offsets = [0, 1], sizes = [4, 384], strides = [1, 1]} : vector<4x512xbf16> to vector<4x384xbf16>
    %cst_62 = arith.constant dense<0.000000e+00> : vector<4x384xf32>
    %125 = tpu.matmul %123, %124, %cst_62 {dimension_numbers = #tpu.dot_dimension_numbers<[1], [0], [0], [1], [0, 0, 1, 1], [], []>} : vector<4x4xbf16>, vector<4x384xbf16>, vector<4x384xf32> -> vector<4x384xf32>
    %126 = arith.addf %121, %125 : vector<4x384xf32>
    %c2_63 = arith.constant 2 : index
    %c0_64 = arith.constant 0 : index
    %c0_65 = arith.constant 0 : index
    %127 = vector.load %arg3[%c2_63, %c0_64, %c0_65] : memref<9x4x4xbf16, #tpu.memory_space<vmem>>, vector<1x4x4xbf16>
    %128 = vector.shape_cast %127 : vector<1x4x4xbf16> to vector<4x4xbf16>
    %129 = vector.extract_strided_slice %117 {offsets = [0, 2], sizes = [4, 384], strides = [1, 1]} : vector<4x512xbf16> to vector<4x384xbf16>
    %cst_66 = arith.constant dense<0.000000e+00> : vector<4x384xf32>
    %130 = tpu.matmul %128, %129, %cst_66 {dimension_numbers = #tpu.dot_dimension_numbers<[1], [0], [0], [1], [0, 0, 1, 1], [], []>} : vector<4x4xbf16>, vector<4x384xbf16>, vector<4x384xf32> -> vector<4x384xf32>
    %131 = arith.addf %126, %130 : vector<4x384xf32>
    %c3_67 = arith.constant 3 : index
    %c0_68 = arith.constant 0 : index
    %c0_69 = arith.constant 0 : index
    %132 = vector.load %arg3[%c3_67, %c0_68, %c0_69] : memref<9x4x4xbf16, #tpu.memory_space<vmem>>, vector<1x4x4xbf16>
    %133 = vector.shape_cast %132 : vector<1x4x4xbf16> to vector<4x4xbf16>
    %134 = vector.extract_strided_slice %117 {offsets = [0, 18], sizes = [4, 384], strides = [1, 1]} : vector<4x512xbf16> to vector<4x384xbf16>
    %cst_70 = arith.constant dense<0.000000e+00> : vector<4x384xf32>
    %135 = tpu.matmul %133, %134, %cst_70 {dimension_numbers = #tpu.dot_dimension_numbers<[1], [0], [0], [1], [0, 0, 1, 1], [], []>} : vector<4x4xbf16>, vector<4x384xbf16>, vector<4x384xf32> -> vector<4x384xf32>
    %136 = arith.addf %131, %135 : vector<4x384xf32>
    %c4_71 = arith.constant 4 : index
    %c0_72 = arith.constant 0 : index
    %c0_73 = arith.constant 0 : index
    %137 = vector.load %arg3[%c4_71, %c0_72, %c0_73] : memref<9x4x4xbf16, #tpu.memory_space<vmem>>, vector<1x4x4xbf16>
    %138 = vector.shape_cast %137 : vector<1x4x4xbf16> to vector<4x4xbf16>
    %139 = vector.extract_strided_slice %117 {offsets = [0, 19], sizes = [4, 384], strides = [1, 1]} : vector<4x512xbf16> to vector<4x384xbf16>
    %cst_74 = arith.constant dense<0.000000e+00> : vector<4x384xf32>
    %140 = tpu.matmul %138, %139, %cst_74 {dimension_numbers = #tpu.dot_dimension_numbers<[1], [0], [0], [1], [0, 0, 1, 1], [], []>} : vector<4x4xbf16>, vector<4x384xbf16>, vector<4x384xf32> -> vector<4x384xf32>
    %141 = arith.addf %136, %140 : vector<4x384xf32>
    %c5_75 = arith.constant 5 : index
    %c0_76 = arith.constant 0 : index
    %c0_77 = arith.constant 0 : index
    %142 = vector.load %arg3[%c5_75, %c0_76, %c0_77] : memref<9x4x4xbf16, #tpu.memory_space<vmem>>, vector<1x4x4xbf16>
    %143 = vector.shape_cast %142 : vector<1x4x4xbf16> to vector<4x4xbf16>
    %144 = vector.extract_strided_slice %117 {offsets = [0, 20], sizes = [4, 384], strides = [1, 1]} : vector<4x512xbf16> to vector<4x384xbf16>
    %cst_78 = arith.constant dense<0.000000e+00> : vector<4x384xf32>
    %145 = tpu.matmul %143, %144, %cst_78 {dimension_numbers = #tpu.dot_dimension_numbers<[1], [0], [0], [1], [0, 0, 1, 1], [], []>} : vector<4x4xbf16>, vector<4x384xbf16>, vector<4x384xf32> -> vector<4x384xf32>
    %146 = arith.addf %141, %145 : vector<4x384xf32>
    %c6_79 = arith.constant 6 : index
    %c0_80 = arith.constant 0 : index
    %c0_81 = arith.constant 0 : index
    %147 = vector.load %arg3[%c6_79, %c0_80, %c0_81] : memref<9x4x4xbf16, #tpu.memory_space<vmem>>, vector<1x4x4xbf16>
    %148 = vector.shape_cast %147 : vector<1x4x4xbf16> to vector<4x4xbf16>
    %149 = vector.extract_strided_slice %117 {offsets = [0, 36], sizes = [4, 384], strides = [1, 1]} : vector<4x512xbf16> to vector<4x384xbf16>
    %cst_82 = arith.constant dense<0.000000e+00> : vector<4x384xf32>
    %150 = tpu.matmul %148, %149, %cst_82 {dimension_numbers = #tpu.dot_dimension_numbers<[1], [0], [0], [1], [0, 0, 1, 1], [], []>} : vector<4x4xbf16>, vector<4x384xbf16>, vector<4x384xf32> -> vector<4x384xf32>
    %151 = arith.addf %146, %150 : vector<4x384xf32>
    %c7_83 = arith.constant 7 : index
    %c0_84 = arith.constant 0 : index
    %c0_85 = arith.constant 0 : index
    %152 = vector.load %arg3[%c7_83, %c0_84, %c0_85] : memref<9x4x4xbf16, #tpu.memory_space<vmem>>, vector<1x4x4xbf16>
    %153 = vector.shape_cast %152 : vector<1x4x4xbf16> to vector<4x4xbf16>
    %154 = vector.extract_strided_slice %117 {offsets = [0, 37], sizes = [4, 384], strides = [1, 1]} : vector<4x512xbf16> to vector<4x384xbf16>
    %cst_86 = arith.constant dense<0.000000e+00> : vector<4x384xf32>
    %155 = tpu.matmul %153, %154, %cst_86 {dimension_numbers = #tpu.dot_dimension_numbers<[1], [0], [0], [1], [0, 0, 1, 1], [], []>} : vector<4x4xbf16>, vector<4x384xbf16>, vector<4x384xf32> -> vector<4x384xf32>
    %156 = arith.addf %151, %155 : vector<4x384xf32>
    %c8_87 = arith.constant 8 : index
    %c0_88 = arith.constant 0 : index
    %c0_89 = arith.constant 0 : index
    %157 = vector.load %arg3[%c8_87, %c0_88, %c0_89] : memref<9x4x4xbf16, #tpu.memory_space<vmem>>, vector<1x4x4xbf16>
    %158 = vector.shape_cast %157 : vector<1x4x4xbf16> to vector<4x4xbf16>
    %159 = vector.extract_strided_slice %117 {offsets = [0, 38], sizes = [4, 384], strides = [1, 1]} : vector<4x512xbf16> to vector<4x384xbf16>
    %cst_90 = arith.constant dense<0.000000e+00> : vector<4x384xf32>
    %160 = tpu.matmul %158, %159, %cst_90 {dimension_numbers = #tpu.dot_dimension_numbers<[1], [0], [0], [1], [0, 0, 1, 1], [], []>} : vector<4x4xbf16>, vector<4x384xbf16>, vector<4x384xf32> -> vector<4x384xf32>
    %161 = arith.addf %156, %160 : vector<4x384xf32>
    %cst_91 = arith.constant 0.000000e+00 : f32
    %162 = vector.shape_cast %4 : vector<1x384xi1> to vector<1x384xi1>
    %163 = vector.broadcast %162 : vector<1x384xi1> to vector<4x384xi1>
    %164 = vector.broadcast %cst_91 : f32 to vector<4x384xf32>
    %165 = arith.select %163, %161, %164 : vector<4x384xi1>, vector<4x384xf32>
    %cst_92 = arith.constant dense<0.000000e+00> : vector<4xf32>
    %166 = vector.multi_reduction <add>, %165, %cst_92 [1] : vector<4x384xf32> to vector<4xf32>
    %167 = vector.shape_cast %166 : vector<4xf32> to vector<4x1xf32>
    %cst_93 = arith.constant 3.906250e-03 : f32
    %168 = vector.broadcast %cst_93 : f32 to vector<4x1xf32>
    %169 = arith.mulf %167, %168 : vector<4x1xf32>
    %170 = arith.mulf %165, %165 : vector<4x384xf32>
    %cst_94 = arith.constant dense<0.000000e+00> : vector<4xf32>
    %171 = vector.multi_reduction <add>, %170, %cst_94 [1] : vector<4x384xf32> to vector<4xf32>
    %172 = vector.shape_cast %171 : vector<4xf32> to vector<4x1xf32>
    %cst_95 = arith.constant 3.906250e-03 : f32
    %173 = vector.broadcast %cst_95 : f32 to vector<4x1xf32>
    %174 = arith.mulf %172, %173 : vector<4x1xf32>
    %175 = arith.mulf %169, %169 : vector<4x1xf32>
    %176 = arith.subf %174, %175 : vector<4x1xf32>
    %cst_96 = arith.constant 0.000000e+00 : f32
    %177 = vector.broadcast %cst_96 : f32 to vector<4x1xf32>
    %178 = arith.maximumf %176, %177 : vector<4x1xf32>
    %179 = vector.broadcast %169 : vector<4x1xf32> to vector<4x384xf32>
    %180 = arith.subf %165, %179 : vector<4x384xf32>
    %cst_97 = arith.constant 9.99999974E-6 : f32
    %181 = vector.broadcast %cst_97 : f32 to vector<4x1xf32>
    %182 = arith.addf %178, %181 : vector<4x1xf32>
    %183 = math.rsqrt %182 : vector<4x1xf32>
    %184 = vector.broadcast %183 : vector<4x1xf32> to vector<4x384xf32>
    %185 = arith.mulf %180, %184 : vector<4x384xf32>
    %186 = vector.extract_strided_slice %18 {offsets = [0, 19], sizes = [4, 384], strides = [1, 1]} : vector<4x512xf32> to vector<4x384xf32>
    %187 = arith.addf %186, %185 : vector<4x384xf32>
    %c0_98 = arith.constant 0 : index
    %c0_99 = arith.constant 0 : index
    %c0_100 = arith.constant 0 : index
    %188 = vector.load %arg5[%c0_98, %c0_99, %c0_100] : memref<1x4x384xf32, #tpu.memory_space<vmem>>, vector<1x4x384xf32>
    %189 = vector.shape_cast %188 : vector<1x4x384xf32> to vector<4x384xf32>
    %190 = vector.shape_cast %187 : vector<4x384xf32> to vector<1x4x384xf32>
    tpu.vector_store %arg5[%c0_98, %c0_99, %c0_100], %190 {strides = array<i32>} : memref<1x4x384xf32, #tpu.memory_space<vmem>>, vector<1x4x384xf32>,
    return
  }
  func.func @transform_0(%arg0: i32) -> (i32, i32, i32) {
    %c0_i32 = arith.constant 0 : i32
    %c0_i32_0 = arith.constant 0 : i32
    %c0_i32_1 = arith.constant 0 : i32
    return %arg0, %c0_i32, %c0_i32_0 : i32, i32, i32
  }
  func.func @transform_1(%arg0: i32) -> (i32, i32, i32) {
    %c0_i32 = arith.constant 0 : i32
    %c0_i32_0 = arith.constant 0 : i32
    %c0_i32_1 = arith.constant 0 : i32
    %c0_i32_2 = arith.constant 0 : i32
    return %c0_i32, %c0_i32_0, %c0_i32_1 : i32, i32, i32
  }
  func.func @transform_2(%arg0: i32) -> (i32, i32, i32) {
    %c0_i32 = arith.constant 0 : i32
    %c0_i32_0 = arith.constant 0 : i32
    %c0_i32_1 = arith.constant 0 : i32
    %c0_i32_2 = arith.constant 0 : i32
    return %c0_i32, %c0_i32_0, %c0_i32_1 : i32, i32, i32
  }
  func.func @transform_3(%arg0: i32) -> (i32, i32) {
    %c0_i32 = arith.constant 0 : i32
    %c0_i32_0 = arith.constant 0 : i32
    %c0_i32_1 = arith.constant 0 : i32
    return %c0_i32, %c0_i32_0 : i32, i32
  }
  func.func @transform_4(%arg0: i32) -> (i32, i32, i32) {
    %c0_i32 = arith.constant 0 : i32
    %c0_i32_0 = arith.constant 0 : i32
    %c0_i32_1 = arith.constant 0 : i32
    return %arg0, %c0_i32, %c0_i32_0 : i32, i32, i32
  }
}

</mosaic_0001>

<llo_original>
// kernel: tpu_custom_call.1
$region0: #{tpu_custom_call.1}
  #allocation0 [shape = 'u32[]', space=smem, size = 0x4, offset = 0x4, fixed_abs, tag = 'smem constant byte address 0x4 - core index']
  #allocation1 [shape = 'u32[144,128]{1,0:T(1,128)}', space=vmem, size = 0x12000, scoped, tag = 'internal scratch']
  %s0 = inlined_call_operand.vmem [shape: f32[2,4,324], index: 0, kind: input, shape index: {}]
  %s1 = inlined_call_operand.vmem [shape: bf16[9,4,4], index: 1, kind: input, shape index: {}]
  %s2 = inlined_call_operand.vmem [shape: bf16[9,4,4], index: 2, kind: input, shape index: {}]
  %s3 = inlined_call_operand.vmem [shape: f32[5,512], index: 3, kind: input, shape index: {}]
  %s4 = inlined_call_operand.hbm [shape: f32[2,4,384], index: 4, kind: output, shape index: {}]
  %s5 = sld [smem:[#allocation0]]
  $region49: #{tpu_custom_call.1} parent=0
    _
  %s7 = ssub.s32 1, %s5
  %s8 = scalar_select 0, %s7, %s5
  $region1: #{tpu_custom_call.1} parent=0
    #allocation2 [shape = 'u8[12288]{0}', space=vmem, size = 0x3000, scoped, tag = 'output window, operand 0']
    #allocation3 [shape = 's32[2]{0}', space=sflag, size = 0x8, scoped, tag = 'scoped memory for tpu_custom_call.1']
    %9 = vsyncpa [#allocation3], 0
    %s10 = scalar_lea.sflag [#allocation3], 1
    %11 = vsyncpa %s10, 0
    loop: start=0, step=1, limit=4
    $region2: #{tpu_custom_call.1} parent=1 // loop_pre_header
      _
    $region3: #{tpu_custom_call.1} parent=1 // loop_header
      %s13 = sphi 0, %s17
      %p14 = scmp.ge.s32.totalorder %s13, 4
      %s23 = sphi 0, %s25
      %s26 = sphi 0, %s23
      %s27 = sphi 0, %s26
      %s43 = sphi 0, %s27
      %s47 = sphi 0, %s47
      %s49 = sphi 0, %s47
      %s50 = sphi 0, %s49
      %s64 = sphi 0, %s50
      %s68 = sphi 0, %s68
      %s70 = sphi 0, %s68
      %s71 = sphi 0, %s70
      %s85 = sphi 0, %s71
      %s89 = sphi 0, %s89
      %s91 = sphi 0, %s89
      %s92 = sphi 0, %s91
      %s106 = sphi 0, %s92
      %s112 = sphi 0, %s114
      %s115 = sphi 0, %s112
      %s116 = sphi 0, %s115
      %s132 = sphi 0, %s116
    $region4: #{tpu_custom_call.1} parent=1 // loop_header_branch
      %16 = sbr.rel (%p14) target = $region8
    $region5: #{tpu_custom_call.1} parent=1 // loop_body
      %s18 = ssub.s32 %s13, 1
      %s19 = ssub.s32 %s13, 2
      %s20 = sadd.s32 %s13, 1
      %s21 = ssub.s32 %s13, %s20
      %p22 = scmp.eq.s32.totalorder %s21, 0
      %s24 = sadd.s32 %s23, 1
      %s25 = scalar_select %p22, %s23, %s24
      %p28 = pneg %p22
      %p29 = scmp.eq.s32.totalorder %s13, 1
      %p30 = por %p28, %p29
      %p31 = scmp.ne.s32.totalorder %s23, %s26
      %p32 = scmp.eq.s32.totalorder %s13, 0
      %p33 = por %p31, %p32
      %p34 = scmp.ne.s32.totalorder %s23, %s26
      %p35 = scmp.eq.s32.totalorder %s18, 1
      %p36 = por %p34, %p35
      %p37 = scmp.ne.s32.totalorder %s26, %s27
      %p38 = scmp.eq.s32.totalorder %s18, 0
      %p39 = por %p37, %p38
      %p40 = scmp.ne.s32.totalorder %s26, %s27
      %p41 = scmp.eq.s32.totalorder %s19, 1
      %p42 = por %p40, %p41
      %p44 = scmp.ne.s32.totalorder %s27, %s43
      %p45 = scmp.eq.s32.totalorder %s19, 0
      %p46 = por %p44, %p45
      %s48 = sadd.s32 %s47, 1
      %p51 = scmp.eq.s32.totalorder %s13, 1
      %p52 = scmp.ne.s32.totalorder %s47, %s49
      %p53 = scmp.eq.s32.totalorder %s13, 0
      %p54 = por %p52, %p53
      %p55 = scmp.ne.s32.totalorder %s47, %s49
      %p56 = scmp.eq.s32.totalorder %s18, 1
      %p57 = por %p55, %p56
      %p58 = scmp.ne.s32.totalorder %s49, %s50
      %p59 = scmp.eq.s32.totalorder %s18, 0
      %p60 = por %p58, %p59
      %p61 = scmp.ne.s32.totalorder %s49, %s50
      %p62 = scmp.eq.s32.totalorder %s19, 1
      %p63 = por %p61, %p62
      %p65 = scmp.ne.s32.totalorder %s50, %s64
      %p66 = scmp.eq.s32.totalorder %s19, 0
      %p67 = por %p65, %p66
      %s69 = sadd.s32 %s68, 1
      %p72 = scmp.eq.s32.totalorder %s13, 1
      %p73 = scmp.ne.s32.totalorder %s68, %s70
      %p74 = scmp.eq.s32.totalorder %s13, 0
      %p75 = por %p73, %p74
      %p76 = scmp.ne.s32.totalorder %s68, %s70
      %p77 = scmp.eq.s32.totalorder %s18, 1
      %p78 = por %p76, %p77
      %p79 = scmp.ne.s32.totalorder %s70, %s71
      %p80 = scmp.eq.s32.totalorder %s18, 0
      %p81 = por %p79, %p80
      %p82 = scmp.ne.s32.totalorder %s70, %s71
      %p83 = scmp.eq.s32.totalorder %s19, 1
      %p84 = por %p82, %p83
      %p86 = scmp.ne.s32.totalorder %s71, %s85
      %p87 = scmp.eq.s32.totalorder %s19, 0
      %p88 = por %p86, %p87
      %s90 = sadd.s32 %s89, 1
      %p93 = scmp.eq.s32.totalorder %s13, 1
      %p94 = scmp.ne.s32.totalorder %s89, %s91
      %p95 = scmp.eq.s32.totalorder %s13, 0
      %p96 = por %p94, %p95
      %p97 = scmp.ne.s32.totalorder %s89, %s91
      %p98 = scmp.eq.s32.totalorder %s18, 1
      %p99 = por %p97, %p98
      %p100 = scmp.ne.s32.totalorder %s91, %s92
      %p101 = scmp.eq.s32.totalorder %s18, 0
      %p102 = por %p100, %p101
      %p103 = scmp.ne.s32.totalorder %s91, %s92
      %p104 = scmp.eq.s32.totalorder %s19, 1
      %p105 = por %p103, %p104
      %p107 = scmp.ne.s32.totalorder %s92, %s106
      %p108 = scmp.eq.s32.totalorder %s19, 0
      %p109 = por %p107, %p108
      %s110 = ssub.s32 %s13, %s20
      %p111 = scmp.eq.s32.totalorder %s110, 0
      %s113 = sadd.s32 %s112, 1
      %s114 = scalar_select %p111, %s112, %s113
      %p117 = pneg %p111
      %p118 = scmp.eq.s32.totalorder %s13, 1
      %p119 = por %p117, %p118
      %p120 = scmp.ne.s32.totalorder %s112, %s115
      %p121 = scmp.eq.s32.totalorder %s13, 0
      %p122 = por %p120, %p121
      %p123 = scmp.ne.s32.totalorder %s112, %s115
      %p124 = scmp.eq.s32.totalorder %s18, 1
      %p125 = por %p123, %p124
      %p126 = scmp.ne.s32.totalorder %s115, %s116
      %p127 = scmp.eq.s32.totalorder %s18, 0
      %p128 = por %p126, %p127
      %p129 = scmp.ne.s32.totalorder %s115, %s116
      %p130 = scmp.eq.s32.totalorder %s19, 1
      %p131 = por %p129, %p130
      %p133 = scmp.ne.s32.totalorder %s116, %s132
      %p134 = scmp.eq.s32.totalorder %s19, 0
      %p135 = por %p133, %p134
      %p136 = scmp.le.s32.totalorder 1, %s13
      %p137 = scmp.lt.s32.totalorder %s13, 3
      %p138 = pnand %p136, %p137
      %p139 = pneg %p138
      // Predicated region
      $region9: #{tpu_custom_call.1} parent=5 // pred_check
        _
      $region10: #{tpu_custom_call.1} parent=5 // pred_check_branch
        %141 = sbr.rel (%p138) target = $region12
      $region11: #{tpu_custom_call.1} parent=5 // pred_region
        %s142 = ssub.s32 %s13, 1
        // Predicated region
        $region13: #{tpu_custom_call.1} parent=11 // pred_check
          %p143 = pneg %p60
        $region14: #{tpu_custom_call.1} parent=11 // pred_check_branch
          %145 = sbr.rel (%p143) target = $region16
        $region15: #{tpu_custom_call.1} parent=11 // pred_region
          _
        $region16: #{tpu_custom_call.1} parent=11 // pred_fallthru
          _
        // Predicated region
        $region17: #{tpu_custom_call.1} parent=11 // pred_check
          %p146 = pneg %p81
        $region18: #{tpu_custom_call.1} parent=11 // pred_check_branch
          %148 = sbr.rel (%p146) target = $region20
        $region19: #{tpu_custom_call.1} parent=11 // pred_region
          _
        $region20: #{tpu_custom_call.1} parent=11 // pred_fallthru
          _
        // Predicated region
        $region21: #{tpu_custom_call.1} parent=11 // pred_check
          %p149 = pneg %p102
        $region22: #{tpu_custom_call.1} parent=11 // pred_check_branch
          %151 = sbr.rel (%p149) target = $region24
        $region23: #{tpu_custom_call.1} parent=11 // pred_region
          _
        $region24: #{tpu_custom_call.1} parent=11 // pred_fallthru
          _
      $region12: #{tpu_custom_call.1} parent=5 // pred_fallthru
        _
      %p152 = scmp.lt.s32.totalorder %s13, 2
      // Predicated region
      $region25: #{tpu_custom_call.1} parent=5 // pred_check
        %p153 = pneg %p152
      $region26: #{tpu_custom_call.1} parent=5 // pred_check_branch
        %155 = sbr.rel (%p153) target = $region28
      $region27: #{tpu_custom_call.1} parent=5 // pred_region
        // Predicated region
        $region29: #{tpu_custom_call.1} parent=27 // pred_check
          %p156 = pneg %p33
        $region30: #{tpu_custom_call.1} parent=27 // pred_check_branch
          %158 = sbr.rel (%p156) target = $region32
        $region31: #{tpu_custom_call.1} parent=27 // pred_region
          %p159 = scmp.lt.s32.totalorder %s13, 1
          %s160 = scalar_select %p159, %s13, 1
          %s161 = smul.addr %s160, 3
          %s162 = smul.addr %s161, 4
          %s163 = scalar_lea.vmem %s0, %s162
        $region32: #{tpu_custom_call.1} parent=27 // pred_fallthru
          _
      $region28: #{tpu_custom_call.1} parent=5 // pred_fallthru
        _
      %p164 = scmp.le.s32.totalorder 1, %s13
      %p165 = scmp.lt.s32.totalorder %s13, 3
      %p166 = pnand %p164, %p165
      %p167 = pneg %p166
      // Predicated region
      $region33: #{tpu_custom_call.1} parent=5 // pred_check
        _
      $region34: #{tpu_custom_call.1} parent=5 // pred_check_branch
        %169 = sbr.rel (%p166) target = $region36
      $region35: #{tpu_custom_call.1} parent=5 // pred_region
        %s170 = ssub.s32 %s13, 1
        %p171 = scmp.lt.s32.totalorder %s18, 1
        %s172 = scalar_select %p171, %s18, 1
        %s173 = smul.addr %s172, 3
        %s174 = smul.addr %s173, 4
        %s175 = scalar_lea.vmem %s0, %s174
        %p176 = pneg %p39
        %p177 = pneg %p36
        %p178 = pneg %p60
        %p179 = pneg %p57
        %p180 = pneg %p81
        %p181 = pneg %p78
        %p182 = pneg %p102
        %p183 = pneg %p99
        %p184 = pneg %p128
        %p185 = pneg %p125
        %s186 = sand.u32 %s115, 1
        %s187 = scalar_lea.sflag [#allocation3], %s186
        %s188 = sand.u32 %s115, 1
        %s189 = smul.addr %s188, 12
        %s190 = scalar_lea.vmem [#allocation2], %s189
        %p191 = scmp.lt.s32.totalorder %s18, 1
        %s192 = scalar_select %p191, %s18, 1
        %s193 = smul.addr %s192, 3
        %s194 = smul.addr %s193, 4
        %s195 = scalar_lea.vmem %s0, %s194
        %v197 = vld [vmem:[%s195] sm:$0xff]
        %v198 = vld [vmem:[%s195 + $0x8] sm:$0xf]
        %v199 = vld [vmem:[%s3] ss:$8 sm:$0x7]
        %vm200 = vcmp.ne.f32.partialorder %v199, 0.0
        %s201 = scalar_lea.vmem %s3, 1
        %v202 = vld [vmem:[%s201] ss:$8 sm:$0xf]
        %vm203 = vcmp.ne.f32.partialorder %v202, 0.0
        %s204 = scalar_lea.vmem %s3, 2
        %v205 = vld [vmem:[%s204] ss:$8 sm:$0xf]
        %vm206 = vcmp.ne.f32.partialorder %v205, 0.0
        %s207 = scalar_lea.vmem %s3, 3
        %v208 = vld [vmem:[%s207] ss:$8 sm:$0xf]
        %vm209 = vcmp.ne.f32.partialorder %v208, 0.0
        %s210 = scalar_lea.vmem %s3, 4
        %v211 = vld [vmem:[%s210] ss:$8 sm:$0xf]
        %vm212 = vcmp.ne.f32.partialorder %v211, 0.0
        %v214 = vcombine.high %v197, %v197
        %vm216 = vcmask 556032
        %v217 = vsel %vm216, %v198, 0.0
        %v218 = vpack.c.bf16 %v197, %v197
        %v219 = vpack.c.bf16 %v214, %v214
        %v220 = vpack.c.bf16 %v217, %v217
        %v221 = vpack.c.bf16 0.0, 0.0
        %v222 = vld [vmem:[%s1] sm:$0x3]
        %s223 = scalar_lea.vmem %s1, 2
        %v224 = vld [vmem:[%s223] sm:$0x3]
        %229 = vrot.lane.b32.xlu0 %v218, 127
        %v230 = vpop.permute.xlu0 %229
        %231 = vrot.lane.b32.xlu0 %v219, 127
        %v232 = vpop.permute.xlu0 %231
        %233 = vrot.lane.b32.xlu0 %v220, 127
        %v234 = vpop.permute.xlu0 %233
        %235 = vrot.lane.b32.xlu0 %v221, 127
        %v236 = vpop.permute.xlu0 %235
        %vm237 = vcmask 1039360
        %v238 = vsel %vm237, %v230, %v232
        %v239 = vsel %vm237, %v232, %v234
        %v240 = vsel %vm237, %v234, %v236
        %vm241 = vcmask 31744
        %v243 = vsel %vm241, %v224, 0
        %vm245 = vcmask 1041408
        %v247 = vsel %vm245, %v238, 0
        %v250 = vsel %vm245, %v239, 0
        %v253 = vsel %vm245, %v240, 0
        %255 = vmatprep.subr.bf16.mxu0 0
        %256 = vmatpush1.bf16.msra.mxu0 0
        %257 = vmatprep.subr.bf16.mxu0 0
        %258 = vmatpush1.bf16.msra.mxu0 0
        %259 = vmatprep.subr.bf16.mxu0 0
        %260 = vmatpush1.bf16.msra.mxu0 0
        %261 = vmatprep.subr.bf16.mxu0 0
        %262 = vmatpush1.bf16.msra.mxu0 0
        %263 = vmatprep.subr.bf16.mxu0 0
        %264 = vmatpush1.bf16.msra.mxu0 0
        %265 = vmatprep.subr.bf16.mxu0 0
        %266 = vmatpush1.bf16.msra.mxu0 0
        %267 = vmatprep.subr.bf16.mxu0 0
        %268 = vmatpush1.bf16.msra.mxu0 0
        %269 = vmatprep.subr.bf16.mxu0 %v250
        %270 = vmatpush1.bf16.msra.mxu0 %v247
        %271 = vmatprep.subr.bf16.mxu0 0
        %272 = vmatpush2.bf16.msra.mxu0 0
        %273 = vmatprep.subr.bf16.mxu0 0
        %274 = vmatpush2.bf16.msra.mxu0 0
        %275 = vmatprep.subr.bf16.mxu0 0
        %276 = vmatpush2.bf16.msra.mxu0 0
        %277 = vmatprep.subr.bf16.mxu0 0
        %278 = vmatpush2.bf16.msra.mxu0 0
        %279 = vmatprep.subr.bf16.mxu0 0
        %280 = vmatpush2.bf16.msra.mxu0 0
        %281 = vmatprep.subr.bf16.mxu0 0
        %282 = vmatpush2.bf16.msra.mxu0 0
        %283 = vmatprep.subr.bf16.mxu0 0
        %284 = vmatpush2.bf16.msra.mxu0 0
        %285 = vmatprep.subr.bf16.mxu0 0
        %286 = vmatpush2.bf16.msra.mxu0 0
        %287 = vmatprep.mubr.bf16.mxu0 0
        %288 = vmatmul.mubr.bf16.gmra.mxu0 %v243
        %v289 = vpop.f32.mrf.mxu0
        %v290 = vadd.f32 0.0, %v289
        %v291 = vpop.f32.mrf.mxu0
        %v292 = vadd.f32 0.0, %v291
        %v293 = vpop.f32.mrf.mxu0
        %v294 = vpop.f32.mrf.mxu0
        %295 = vdwg.mxu0
        %296 = vmatprep.subr.bf16.mxu0 0
        %297 = vmatpush1.bf16.msra.mxu0 0
        %298 = vmatprep.subr.bf16.mxu0 0
        %299 = vmatpush1.bf16.msra.mxu0 0
        %300 = vmatprep.subr.bf16.mxu0 0
        %301 = vmatpush1.bf16.msra.mxu0 0
        %302 = vmatprep.subr.bf16.mxu0 0
        %303 = vmatpush1.bf16.msra.mxu0 0
        %304 = vmatprep.subr.bf16.mxu0 0
        %305 = vmatpush1.bf16.msra.mxu0 0
        %306 = vmatprep.subr.bf16.mxu0 0
        %307 = vmatpush1.bf16.msra.mxu0 0
        %308 = vmatprep.subr.bf16.mxu0 0
        %309 = vmatpush1.bf16.msra.mxu0 0
        %310 = vmatprep.subr.bf16.mxu0 0
        %311 = vmatpush1.bf16.msra.mxu0 %v253
        %312 = vmatprep.subr.bf16.mxu0 0
        %313 = vmatpush2.bf16.msra.mxu0 0
        %314 = vmatprep.subr.bf16.mxu0 0
        %315 = vmatpush2.bf16.msra.mxu0 0
        %316 = vmatprep.subr.bf16.mxu0 0
        %317 = vmatpush2.bf16.msra.mxu0 0
        %318 = vmatprep.subr.bf16.mxu0 0
        %319 = vmatpush2.bf16.msra.mxu0 0
        %320 = vmatprep.subr.bf16.mxu0 0
        %321 = vmatpush2.bf16.msra.mxu0 0
        %322 = vmatprep.subr.bf16.mxu0 0
        %323 = vmatpush2.bf16.msra.mxu0 0
        %324 = vmatprep.subr.bf16.mxu0 0
        %325 = vmatpush2.bf16.msra.mxu0 0
        %326 = vmatprep.subr.bf16.mxu0 0
        %327 = vmatpush2.bf16.msra.mxu0 0
        %328 = vmatprep.mubr.bf16.mxu0 0
        %329 = vmatmul.mubr.bf16.gmra.mxu0 %v243
        %v330 = vpop.f32.mrf.mxu0
        %v331 = vadd.f32 0.0, %v330
        %v332 = vpop.f32.mrf.mxu0
        %v333 = vpop.f32.mrf.mxu0
        %v334 = vpop.f32.mrf.mxu0
        %335 = vdwg.mxu0
        %v337 = vsel %vm241, %v222, 0
        %v340 = vsel %vm245, %v218, 0
        %v343 = vsel %vm245, %v219, 0
        %v346 = vsel %vm245, %v220, 0
        %348 = vmatprep.subr.bf16.mxu0 0
        %349 = vmatpush1.bf16.msra.mxu0 0
        %350 = vmatprep.subr.bf16.mxu0 0
        %351 = vmatpush1.bf16.msra.mxu0 0
        %352 = vmatprep.subr.bf16.mxu0 0
        %353 = vmatpush1.bf16.msra.mxu0 0
        %354 = vmatprep.subr.bf16.mxu0 0
        %355 = vmatpush1.bf16.msra.mxu0 0
        %356 = vmatprep.subr.bf16.mxu0 0
        %357 = vmatpush1.bf16.msra.mxu0 0
        %358 = vmatprep.subr.bf16.mxu0 0
        %359 = vmatpush1.bf16.msra.mxu0 0
        %360 = vmatprep.subr.bf16.mxu0 0
        %361 = vmatpush1.bf16.msra.mxu0 0
        %362 = vmatprep.subr.bf16.mxu0 %v343
        %363 = vmatpush1.bf16.msra.mxu0 %v340
        %364 = vmatprep.subr.bf16.mxu0 0
        %365 = vmatpush2.bf16.msra.mxu0 0
        %366 = vmatprep.subr.bf16.mxu0 0
        %367 = vmatpush2.bf16.msra.mxu0 0
        %368 = vmatprep.subr.bf16.mxu0 0
        %369 = vmatpush2.bf16.msra.mxu0 0
        %370 = vmatprep.subr.bf16.mxu0 0
        %371 = vmatpush2.bf16.msra.mxu0 0
        %372 = vmatprep.subr.bf16.mxu0 0
        %373 = vmatpush2.bf16.msra.mxu0 0
        %374 = vmatprep.subr.bf16.mxu0 0
        %375 = vmatpush2.bf16.msra.mxu0 0
        %376 = vmatprep.subr.bf16.mxu0 0
        %377 = vmatpush2.bf16.msra.mxu0 0
        %378 = vmatprep.subr.bf16.mxu0 0
        %379 = vmatpush2.bf16.msra.mxu0 0
        %380 = vmatprep.mubr.bf16.mxu0 0
        %381 = vmatmul.mubr.bf16.gmra.mxu0 %v337
        %v382 = vpop.f32.mrf.mxu0
        %v383 = vadd.f32 %v290, %v382
        %v384 = vpop.f32.mrf.mxu0
        %v385 = vadd.f32 %v292, %v384
        %v386 = vpop.f32.mrf.mxu0
        %v387 = vpop.f32.mrf.mxu0
        %388 = vdwg.mxu0
        %389 = vmatprep.subr.bf16.mxu0 0
        %390 = vmatpush1.bf16.msra.mxu0 0
        %391 = vmatprep.subr.bf16.mxu0 0
        %392 = vmatpush1.bf16.msra.mxu0 0
        %393 = vmatprep.subr.bf16.mxu0 0
        %394 = vmatpush1.bf16.msra.mxu0 0
        %395 = vmatprep.subr.bf16.mxu0 0
        %396 = vmatpush1.bf16.msra.mxu0 0
        %397 = vmatprep.subr.bf16.mxu0 0
        %398 = vmatpush1.bf16.msra.mxu0 0
        %399 = vmatprep.subr.bf16.mxu0 0
        %400 = vmatpush1.bf16.msra.mxu0 0
        %401 = vmatprep.subr.bf16.mxu0 0
        %402 = vmatpush1.bf16.msra.mxu0 0
        %403 = vmatprep.subr.bf16.mxu0 0
        %404 = vmatpush1.bf16.msra.mxu0 %v346
        %405 = vmatprep.subr.bf16.mxu0 0
        %406 = vmatpush2.bf16.msra.mxu0 0
        %407 = vmatprep.subr.bf16.mxu0 0
        %408 = vmatpush2.bf16.msra.mxu0 0
        %409 = vmatprep.subr.bf16.mxu0 0
        %410 = vmatpush2.bf16.msra.mxu0 0
        %411 = vmatprep.subr.bf16.mxu0 0
        %412 = vmatpush2.bf16.msra.mxu0 0
        %413 = vmatprep.subr.bf16.mxu0 0
        %414 = vmatpush2.bf16.msra.mxu0 0
        %415 = vmatprep.subr.bf16.mxu0 0
        %416 = vmatpush2.bf16.msra.mxu0 0
        %417 = vmatprep.subr.bf16.mxu0 0
        %418 = vmatpush2.bf16.msra.mxu0 0
        %419 = vmatprep.subr.bf16.mxu0 0
        %420 = vmatpush2.bf16.msra.mxu0 0
        %421 = vmatprep.mubr.bf16.mxu0 0
        %422 = vmatmul.mubr.bf16.gmra.mxu0 %v337
        %v423 = vpop.f32.mrf.mxu0
        %v424 = vadd.f32 %v331, %v423
        %v425 = vpop.f32.mrf.mxu0
        %v426 = vpop.f32.mrf.mxu0
        %v427 = vpop.f32.mrf.mxu0
        %428 = vdwg.mxu0
        %s429 = scalar_lea.vmem %s1, 4
        %v430 = vld [vmem:[%s429] sm:$0x3]
        %431 = vrot.lane.b32.xlu0 %v218, 126
        %v432 = vpop.permute.xlu0 %431
        %433 = vrot.lane.b32.xlu0 %v219, 126
        %v434 = vpop.permute.xlu0 %433
        %435 = vrot.lane.b32.xlu0 %v220, 126
        %v436 = vpop.permute.xlu0 %435
        %437 = vrot.lane.b32.xlu0 %v221, 126
        %v438 = vpop.permute.xlu0 %437
        %vm439 = vcmask 1031168
        %v440 = vsel %vm439, %v432, %v434
        %v441 = vsel %vm439, %v434, %v436
        %v442 = vsel %vm439, %v436, %v438
        %v444 = vsel %vm241, %v430, 0
        %v447 = vsel %vm245, %v440, 0
        %v450 = vsel %vm245, %v441, 0
        %v453 = vsel %vm245, %v442, 0
        %455 = vmatprep.subr.bf16.mxu0 0
        %456 = vmatpush1.bf16.msra.mxu0 0
        %457 = vmatprep.subr.bf16.mxu0 0
        %458 = vmatpush1.bf16.msra.mxu0 0
        %459 = vmatprep.subr.bf16.mxu0 0
        %460 = vmatpush1.bf16.msra.mxu0 0
        %461 = vmatprep.subr.bf16.mxu0 0
        %462 = vmatpush1.bf16.msra.mxu0 0
        %463 = vmatprep.subr.bf16.mxu0 0
        %464 = vmatpush1.bf16.msra.mxu0 0
        %465 = vmatprep.subr.bf16.mxu0 0
        %466 = vmatpush1.bf16.msra.mxu0 0
        %467 = vmatprep.subr.bf16.mxu0 0
        %468 = vmatpush1.bf16.msra.mxu0 0
        %469 = vmatprep.subr.bf16.mxu0 %v450
        %470 = vmatpush1.bf16.msra.mxu0 %v447
        %471 = vmatprep.subr.bf16.mxu0 0
        %472 = vmatpush2.bf16.msra.mxu0 0
        %473 = vmatprep.subr.bf16.mxu0 0
        %474 = vmatpush2.bf16.msra.mxu0 0
        %475 = vmatprep.subr.bf16.mxu0 0
        %476 = vmatpush2.bf16.msra.mxu0 0
        %477 = vmatprep.subr.bf16.mxu0 0
        %478 = vmatpush2.bf16.msra.mxu0 0
        %479 = vmatprep.subr.bf16.mxu0 0
        %480 = vmatpush2.bf16.msra.mxu0 0
        %481 = vmatprep.subr.bf16.mxu0 0
        %482 = vmatpush2.bf16.msra.mxu0 0
        %483 = vmatprep.subr.bf16.mxu0 0
        %484 = vmatpush2.bf16.msra.mxu0 0
        %485 = vmatprep.subr.bf16.mxu0 0
        %486 = vmatpush2.bf16.msra.mxu0 0
        %487 = vmatprep.mubr.bf16.mxu0 0
        %488 = vmatmul.mubr.bf16.gmra.mxu0 %v444
        %v489 = vpop.f32.mrf.mxu0
        %v490 = vadd.f32 0.0, %v489
        %v491 = vpop.f32.mrf.mxu0
        %v492 = vadd.f32 0.0, %v491
        %v493 = vpop.f32.mrf.mxu0
        %v494 = vpop.f32.mrf.mxu0
        %495 = vdwg.mxu0
        %496 = vmatprep.subr.bf16.mxu0 0
        %497 = vmatpush1.bf16.msra.mxu0 0
        %498 = vmatprep.subr.bf16.mxu0 0
        %499 = vmatpush1.bf16.msra.mxu0 0
        %500 = vmatprep.subr.bf16.mxu0 0
        %501 = vmatpush1.bf16.msra.mxu0 0
        %502 = vmatprep.subr.bf16.mxu0 0
        %503 = vmatpush1.bf16.msra.mxu0 0
        %504 = vmatprep.subr.bf16.mxu0 0
        %505 = vmatpush1.bf16.msra.mxu0 0
        %506 = vmatprep.subr.bf16.mxu0 0
        %507 = vmatpush1.bf16.msra.mxu0 0
        %508 = vmatprep.subr.bf16.mxu0 0
        %509 = vmatpush1.bf16.msra.mxu0 0
        %510 = vmatprep.subr.bf16.mxu0 0
        %511 = vmatpush1.bf16.msra.mxu0 %v453
        %512 = vmatprep.subr.bf16.mxu0 0
        %513 = vmatpush2.bf16.msra.mxu0 0
        %514 = vmatprep.subr.bf16.mxu0 0
        %515 = vmatpush2.bf16.msra.mxu0 0
        %516 = vmatprep.subr.bf16.mxu0 0
        %517 = vmatpush2.bf16.msra.mxu0 0
        %518 = vmatprep.subr.bf16.mxu0 0
        %519 = vmatpush2.bf16.msra.mxu0 0
        %520 = vmatprep.subr.bf16.mxu0 0
        %521 = vmatpush2.bf16.msra.mxu0 0
        %522 = vmatprep.subr.bf16.mxu0 0
        %523 = vmatpush2.bf16.msra.mxu0 0
        %524 = vmatprep.subr.bf16.mxu0 0
        %525 = vmatpush2.bf16.msra.mxu0 0
        %526 = vmatprep.subr.bf16.mxu0 0
        %527 = vmatpush2.bf16.msra.mxu0 0
        %528 = vmatprep.mubr.bf16.mxu0 0
        %529 = vmatmul.mubr.bf16.gmra.mxu0 %v444
        %v530 = vpop.f32.mrf.mxu0
        %v531 = vadd.f32 0.0, %v530
        %v532 = vpop.f32.mrf.mxu0
        %v533 = vpop.f32.mrf.mxu0
        %v534 = vpop.f32.mrf.mxu0
        %535 = vdwg.mxu0
        %v536 = vadd.f32 %v383, %v490
        %v537 = vadd.f32 %v385, %v492
        %v538 = vadd.f32 %v424, %v531
        %s539 = scalar_lea.vmem %s1, 6
        %v540 = vld [vmem:[%s539] sm:$0x3]
        %541 = vrot.lane.b32.xlu0 %v218, 110
        %v542 = vpop.permute.xlu0 %541
        %543 = vrot.lane.b32.xlu0 %v219, 110
        %v544 = vpop.permute.xlu0 %543
        %545 = vrot.lane.b32.xlu0 %v220, 110
        %v546 = vpop.permute.xlu0 %545
        %547 = vrot.lane.b32.xlu0 %v221, 110
        %v548 = vpop.permute.xlu0 %547
        %vm549 = vcmask 900096
        %v550 = vsel %vm549, %v542, %v544
        %v551 = vsel %vm549, %v544, %v546
        %v552 = vsel %vm549, %v546, %v548
        %v554 = vsel %vm241, %v540, 0
        %v557 = vsel %vm245, %v550, 0
        %v560 = vsel %vm245, %v551, 0
        %v563 = vsel %vm245, %v552, 0
        %565 = vmatprep.subr.bf16.mxu0 0
        %566 = vmatpush1.bf16.msra.mxu0 0
        %567 = vmatprep.subr.bf16.mxu0 0
        %568 = vmatpush1.bf16.msra.mxu0 0
        %569 = vmatprep.subr.bf16.mxu0 0
        %570 = vmatpush1.bf16.msra.mxu0 0
        %571 = vmatprep.subr.bf16.mxu0 0
        %572 = vmatpush1.bf16.msra.mxu0 0
        %573 = vmatprep.subr.bf16.mxu0 0
        %574 = vmatpush1.bf16.msra.mxu0 0
        %575 = vmatprep.subr.bf16.mxu0 0
        %576 = vmatpush1.bf16.msra.mxu0 0
        %577 = vmatprep.subr.bf16.mxu0 0
        %578 = vmatpush1.bf16.msra.mxu0 0
        %579 = vmatprep.subr.bf16.mxu0 %v560
        %580 = vmatpush1.bf16.msra.mxu0 %v557
        %581 = vmatprep.subr.bf16.mxu0 0
        %582 = vmatpush2.bf16.msra.mxu0 0
        %583 = vmatprep.subr.bf16.mxu0 0
        %584 = vmatpush2.bf16.msra.mxu0 0
        %585 = vmatprep.subr.bf16.mxu0 0
        %586 = vmatpush2.bf16.msra.mxu0 0
        %587 = vmatprep.subr.bf16.mxu0 0
        %588 = vmatpush2.bf16.msra.mxu0 0
        %589 = vmatprep.subr.bf16.mxu0 0
        %590 = vmatpush2.bf16.msra.mxu0 0
        %591 = vmatprep.subr.bf16.mxu0 0
        %592 = vmatpush2.bf16.msra.mxu0 0
        %593 = vmatprep.subr.bf16.mxu0 0
        %594 = vmatpush2.bf16.msra.mxu0 0
        %595 = vmatprep.subr.bf16.mxu0 0
        %596 = vmatpush2.bf16.msra.mxu0 0
        %597 = vmatprep.mubr.bf16.mxu0 0
        %598 = vmatmul.mubr.bf16.gmra.mxu0 %v554
        %v599 = vpop.f32.mrf.mxu0
        %v600 = vadd.f32 0.0, %v599
        %v601 = vpop.f32.mrf.mxu0
        %v602 = vadd.f32 0.0, %v601
        %v603 = vpop.f32.mrf.mxu0
        %v604 = vpop.f32.mrf.mxu0
        %605 = vdwg.mxu0
        %606 = vmatprep.subr.bf16.mxu0 0
        %607 = vmatpush1.bf16.msra.mxu0 0
        %608 = vmatprep.subr.bf16.mxu0 0
        %609 = vmatpush1.bf16.msra.mxu0 0
        %610 = vmatprep.subr.bf16.mxu0 0
        %611 = vmatpush1.bf16.msra.mxu0 0
        %612 = vmatprep.subr.bf16.mxu0 0
        %613 = vmatpush1.bf16.msra.mxu0 0
        %614 = vmatprep.subr.bf16.mxu0 0
        %615 = vmatpush1.bf16.msra.mxu0 0
        %616 = vmatprep.subr.bf16.mxu0 0
        %617 = vmatpush1.bf16.msra.mxu0 0
        %618 = vmatprep.subr.bf16.mxu0 0
        %619 = vmatpush1.bf16.msra.mxu0 0
        %620 = vmatprep.subr.bf16.mxu0 0
        %621 = vmatpush1.bf16.msra.mxu0 %v563
        %622 = vmatprep.subr.bf16.mxu0 0
        %623 = vmatpush2.bf16.msra.mxu0 0
        %624 = vmatprep.subr.bf16.mxu0 0
        %625 = vmatpush2.bf16.msra.mxu0 0
        %626 = vmatprep.subr.bf16.mxu0 0
        %627 = vmatpush2.bf16.msra.mxu0 0
        %628 = vmatprep.subr.bf16.mxu0 0
        %629 = vmatpush2.bf16.msra.mxu0 0
        %630 = vmatprep.subr.bf16.mxu0 0
        %631 = vmatpush2.bf16.msra.mxu0 0
        %632 = vmatprep.subr.bf16.mxu0 0
        %633 = vmatpush2.bf16.msra.mxu0 0
        %634 = vmatprep.subr.bf16.mxu0 0
        %635 = vmatpush2.bf16.msra.mxu0 0
        %636 = vmatprep.subr.bf16.mxu0 0
        %637 = vmatpush2.bf16.msra.mxu0 0
        %638 = vmatprep.mubr.bf16.mxu0 0
        %639 = vmatmul.mubr.bf16.gmra.mxu0 %v554
        %v640 = vpop.f32.mrf.mxu0
        %v641 = vadd.f32 0.0, %v640
        %v642 = vpop.f32.mrf.mxu0
        %v643 = vpop.f32.mrf.mxu0
        %v644 = vpop.f32.mrf.mxu0
        %645 = vdwg.mxu0
        %v646 = vadd.f32 %v536, %v600
        %v647 = vadd.f32 %v537, %v602
        %v648 = vadd.f32 %v538, %v641
        %s649 = scalar_lea.vmem %s1, 8
        %v650 = vld [vmem:[%s649] sm:$0x3]
        %651 = vrot.lane.b32.xlu0 %v218, 109
        %v652 = vpop.permute.xlu0 %651
        %653 = vrot.lane.b32.xlu0 %v219, 109
        %v654 = vpop.permute.xlu0 %653
        %655 = vrot.lane.b32.xlu0 %v220, 109
        %v656 = vpop.permute.xlu0 %655
        %657 = vrot.lane.b32.xlu0 %v221, 109
        %v658 = vpop.permute.xlu0 %657
        %vm659 = vcmask 891904
        %v660 = vsel %vm659, %v652, %v654
        %v661 = vsel %vm659, %v654, %v656
        %v662 = vsel %vm659, %v656, %v658
        %v664 = vsel %vm241, %v650, 0
        %v667 = vsel %vm245, %v660, 0
        %v670 = vsel %vm245, %v661, 0
        %v673 = vsel %vm245, %v662, 0
        %675 = vmatprep.subr.bf16.mxu0 0
        %676 = vmatpush1.bf16.msra.mxu0 0
        %677 = vmatprep.subr.bf16.mxu0 0
        %678 = vmatpush1.bf16.msra.mxu0 0
        %679 = vmatprep.subr.bf16.mxu0 0
        %680 = vmatpush1.bf16.msra.mxu0 0
        %681 = vmatprep.subr.bf16.mxu0 0
        %682 = vmatpush1.bf16.msra.mxu0 0
        %683 = vmatprep.subr.bf16.mxu0 0
        %684 = vmatpush1.bf16.msra.mxu0 0
        %685 = vmatprep.subr.bf16.mxu0 0
        %686 = vmatpush1.bf16.msra.mxu0 0
        %687 = vmatprep.subr.bf16.mxu0 0
        %688 = vmatpush1.bf16.msra.mxu0 0
        %689 = vmatprep.subr.bf16.mxu0 %v670
        %690 = vmatpush1.bf16.msra.mxu0 %v667
        %691 = vmatprep.subr.bf16.mxu0 0
        %692 = vmatpush2.bf16.msra.mxu0 0
        %693 = vmatprep.subr.bf16.mxu0 0
        %694 = vmatpush2.bf16.msra.mxu0 0
        %695 = vmatprep.subr.bf16.mxu0 0
        %696 = vmatpush2.bf16.msra.mxu0 0
        %697 = vmatprep.subr.bf16.mxu0 0
        %698 = vmatpush2.bf16.msra.mxu0 0
        %699 = vmatprep.subr.bf16.mxu0 0
        %700 = vmatpush2.bf16.msra.mxu0 0
        %701 = vmatprep.subr.bf16.mxu0 0
        %702 = vmatpush2.bf16.msra.mxu0 0
        %703 = vmatprep.subr.bf16.mxu0 0
        %704 = vmatpush2.bf16.msra.mxu0 0
        %705 = vmatprep.subr.bf16.mxu0 0
        %706 = vmatpush2.bf16.msra.mxu0 0
        %707 = vmatprep.mubr.bf16.mxu0 0
        %708 = vmatmul.mubr.bf16.gmra.mxu0 %v664
        %v709 = vpop.f32.mrf.mxu0
        %v710 = vadd.f32 0.0, %v709
        %v711 = vpop.f32.mrf.mxu0
        %v712 = vadd.f32 0.0, %v711
        %v713 = vpop.f32.mrf.mxu0
        %v714 = vpop.f32.mrf.mxu0
        %715 = vdwg.mxu0
        %716 = vmatprep.subr.bf16.mxu0 0
        %717 = vmatpush1.bf16.msra.mxu0 0
        %718 = vmatprep.subr.bf16.mxu0 0
        %719 = vmatpush1.bf16.msra.mxu0 0
        %720 = vmatprep.subr.bf16.mxu0 0
        %721 = vmatpush1.bf16.msra.mxu0 0
        %722 = vmatprep.subr.bf16.mxu0 0
        %723 = vmatpush1.bf16.msra.mxu0 0
        %724 = vmatprep.subr.bf16.mxu0 0
        %725 = vmatpush1.bf16.msra.mxu0 0
        %726 = vmatprep.subr.bf16.mxu0 0
        %727 = vmatpush1.bf16.msra.mxu0 0
        %728 = vmatprep.subr.bf16.mxu0 0
        %729 = vmatpush1.bf16.msra.mxu0 0
        %730 = vmatprep.subr.bf16.mxu0 0
        %731 = vmatpush1.bf16.msra.mxu0 %v673
        %732 = vmatprep.subr.bf16.mxu0 0
        %733 = vmatpush2.bf16.msra.mxu0 0
        %734 = vmatprep.subr.bf16.mxu0 0
        %735 = vmatpush2.bf16.msra.mxu0 0
        %736 = vmatprep.subr.bf16.mxu0 0
        %737 = vmatpush2.bf16.msra.mxu0 0
        %738 = vmatprep.subr.bf16.mxu0 0
        %739 = vmatpush2.bf16.msra.mxu0 0
        %740 = vmatprep.subr.bf16.mxu0 0
        %741 = vmatpush2.bf16.msra.mxu0 0
        %742 = vmatprep.subr.bf16.mxu0 0
        %743 = vmatpush2.bf16.msra.mxu0 0
        %744 = vmatprep.subr.bf16.mxu0 0
        %745 = vmatpush2.bf16.msra.mxu0 0
        %746 = vmatprep.subr.bf16.mxu0 0
        %747 = vmatpush2.bf16.msra.mxu0 0
        %748 = vmatprep.mubr.bf16.mxu0 0
        %749 = vmatmul.mubr.bf16.gmra.mxu0 %v664
        %v750 = vpop.f32.mrf.mxu0
        %v751 = vadd.f32 0.0, %v750
        %v752 = vpop.f32.mrf.mxu0
        %v753 = vpop.f32.mrf.mxu0
        %v754 = vpop.f32.mrf.mxu0
        %755 = vdwg.mxu0
        %v756 = vadd.f32 %v646, %v710
        %v757 = vadd.f32 %v647, %v712
        %v758 = vadd.f32 %v648, %v751
        %s759 = scalar_lea.vmem %s1, 10
        %v760 = vld [vmem:[%s759] sm:$0x3]
        %761 = vrot.lane.b32.xlu0 %v218, 108
        %v762 = vpop.permute.xlu0 %761
        %763 = vrot.lane.b32.xlu0 %v219, 108
        %v764 = vpop.permute.xlu0 %763
        %765 = vrot.lane.b32.xlu0 %v220, 108
        %v766 = vpop.permute.xlu0 %765
        %767 = vrot.lane.b32.xlu0 %v221, 108
        %v768 = vpop.permute.xlu0 %767
        %vm769 = vcmask 883712
        %v770 = vsel %vm769, %v762, %v764
        %v771 = vsel %vm769, %v764, %v766
        %v772 = vsel %vm769, %v766, %v768
        %v774 = vsel %vm241, %v760, 0
        %v777 = vsel %vm245, %v770, 0
        %v780 = vsel %vm245, %v771, 0
        %v783 = vsel %vm245, %v772, 0
        %785 = vmatprep.subr.bf16.mxu0 0
        %786 = vmatpush1.bf16.msra.mxu0 0
        %787 = vmatprep.subr.bf16.mxu0 0
        %788 = vmatpush1.bf16.msra.mxu0 0
        %789 = vmatprep.subr.bf16.mxu0 0
        %790 = vmatpush1.bf16.msra.mxu0 0
        %791 = vmatprep.subr.bf16.mxu0 0
        %792 = vmatpush1.bf16.msra.mxu0 0
        %793 = vmatprep.subr.bf16.mxu0 0
        %794 = vmatpush1.bf16.msra.mxu0 0
        %795 = vmatprep.subr.bf16.mxu0 0
        %796 = vmatpush1.bf16.msra.mxu0 0
        %797 = vmatprep.subr.bf16.mxu0 0
        %798 = vmatpush1.bf16.msra.mxu0 0
        %799 = vmatprep.subr.bf16.mxu0 %v780
        %800 = vmatpush1.bf16.msra.mxu0 %v777
        %801 = vmatprep.subr.bf16.mxu0 0
        %802 = vmatpush2.bf16.msra.mxu0 0
        %803 = vmatprep.subr.bf16.mxu0 0
        %804 = vmatpush2.bf16.msra.mxu0 0
        %805 = vmatprep.subr.bf16.mxu0 0
        %806 = vmatpush2.bf16.msra.mxu0 0
        %807 = vmatprep.subr.bf16.mxu0 0
        %808 = vmatpush2.bf16.msra.mxu0 0
        %809 = vmatprep.subr.bf16.mxu0 0
        %810 = vmatpush2.bf16.msra.mxu0 0
        %811 = vmatprep.subr.bf16.mxu0 0
        %812 = vmatpush2.bf16.msra.mxu0 0
        %813 = vmatprep.subr.bf16.mxu0 0
        %814 = vmatpush2.bf16.msra.mxu0 0
        %815 = vmatprep.subr.bf16.mxu0 0
        %816 = vmatpush2.bf16.msra.mxu0 0
        %817 = vmatprep.mubr.bf16.mxu0 0
        %818 = vmatmul.mubr.bf16.gmra.mxu0 %v774
        %v819 = vpop.f32.mrf.mxu0
        %v820 = vadd.f32 0.0, %v819
        %v821 = vpop.f32.mrf.mxu0
        %v822 = vadd.f32 0.0, %v821
        %v823 = vpop.f32.mrf.mxu0
        %v824 = vpop.f32.mrf.mxu0
        %825 = vdwg.mxu0
        %826 = vmatprep.subr.bf16.mxu0 0
        %827 = vmatpush1.bf16.msra.mxu0 0
        %828 = vmatprep.subr.bf16.mxu0 0
        %829 = vmatpush1.bf16.msra.mxu0 0
        %830 = vmatprep.subr.bf16.mxu0 0
        %831 = vmatpush1.bf16.msra.mxu0 0
        %832 = vmatprep.subr.bf16.mxu0 0
        %833 = vmatpush1.bf16.msra.mxu0 0
        %834 = vmatprep.subr.bf16.mxu0 0
        %835 = vmatpush1.bf16.msra.mxu0 0
        %836 = vmatprep.subr.bf16.mxu0 0
        %837 = vmatpush1.bf16.msra.mxu0 0
        %838 = vmatprep.subr.bf16.mxu0 0
        %839 = vmatpush1.bf16.msra.mxu0 0
        %840 = vmatprep.subr.bf16.mxu0 0
        %841 = vmatpush1.bf16.msra.mxu0 %v783
        %842 = vmatprep.subr.bf16.mxu0 0
        %843 = vmatpush2.bf16.msra.mxu0 0
        %844 = vmatprep.subr.bf16.mxu0 0
        %845 = vmatpush2.bf16.msra.mxu0 0
        %846 = vmatprep.subr.bf16.mxu0 0
        %847 = vmatpush2.bf16.msra.mxu0 0
        %848 = vmatprep.subr.bf16.mxu0 0
        %849 = vmatpush2.bf16.msra.mxu0 0
        %850 = vmatprep.subr.bf16.mxu0 0
        %851 = vmatpush2.bf16.msra.mxu0 0
        %852 = vmatprep.subr.bf16.mxu0 0
        %853 = vmatpush2.bf16.msra.mxu0 0
        %854 = vmatprep.subr.bf16.mxu0 0
        %855 = vmatpush2.bf16.msra.mxu0 0
        %856 = vmatprep.subr.bf16.mxu0 0
        %857 = vmatpush2.bf16.msra.mxu0 0
        %858 = vmatprep.mubr.bf16.mxu0 0
        %859 = vmatmul.mubr.bf16.gmra.mxu0 %v774
        %v860 = vpop.f32.mrf.mxu0
        %v861 = vadd.f32 0.0, %v860
        %v862 = vpop.f32.mrf.mxu0
        %v863 = vpop.f32.mrf.mxu0
        %v864 = vpop.f32.mrf.mxu0
        %865 = vdwg.mxu0
        %v866 = vadd.f32 %v756, %v820
        %v867 = vadd.f32 %v757, %v822
        %v868 = vadd.f32 %v758, %v861
        %s869 = scalar_lea.vmem %s1, 12
        %v870 = vld [vmem:[%s869] sm:$0x3]
        %871 = vrot.lane.b32.xlu0 %v218, 92
        %v872 = vpop.permute.xlu0 %871
        %873 = vrot.lane.b32.xlu0 %v219, 92
        %v874 = vpop.permute.xlu0 %873
        %875 = vrot.lane.b32.xlu0 %v220, 92
        %v876 = vpop.permute.xlu0 %875
        %877 = vrot.lane.b32.xlu0 %v221, 92
        %v878 = vpop.permute.xlu0 %877
        %vm879 = vcmask 752640
        %v880 = vsel %vm879, %v872, %v874
        %v881 = vsel %vm879, %v874, %v876
        %v882 = vsel %vm879, %v876, %v878
        %v884 = vsel %vm241, %v870, 0
        %v887 = vsel %vm245, %v880, 0
        %v890 = vsel %vm245, %v881, 0
        %v893 = vsel %vm245, %v882, 0
        %895 = vmatprep.subr.bf16.mxu0 0
        %896 = vmatpush1.bf16.msra.mxu0 0
        %897 = vmatprep.subr.bf16.mxu0 0
        %898 = vmatpush1.bf16.msra.mxu0 0
        %899 = vmatprep.subr.bf16.mxu0 0
        %900 = vmatpush1.bf16.msra.mxu0 0
        %901 = vmatprep.subr.bf16.mxu0 0
        %902 = vmatpush1.bf16.msra.mxu0 0
        %903 = vmatprep.subr.bf16.mxu0 0
        %904 = vmatpush1.bf16.msra.mxu0 0
        %905 = vmatprep.subr.bf16.mxu0 0
        %906 = vmatpush1.bf16.msra.mxu0 0
        %907 = vmatprep.subr.bf16.mxu0 0
        %908 = vmatpush1.bf16.msra.mxu0 0
        %909 = vmatprep.subr.bf16.mxu0 %v890
        %910 = vmatpush1.bf16.msra.mxu0 %v887
        %911 = vmatprep.subr.bf16.mxu0 0
        %912 = vmatpush2.bf16.msra.mxu0 0
        %913 = vmatprep.subr.bf16.mxu0 0
        %914 = vmatpush2.bf16.msra.mxu0 0
        %915 = vmatprep.subr.bf16.mxu0 0
        %916 = vmatpush2.bf16.msra.mxu0 0
        %917 = vmatprep.subr.bf16.mxu0 0
        %918 = vmatpush2.bf16.msra.mxu0 0
        %919 = vmatprep.subr.bf16.mxu0 0
        %920 = vmatpush2.bf16.msra.mxu0 0
        %921 = vmatprep.subr.bf16.mxu0 0
        %922 = vmatpush2.bf16.msra.mxu0 0
        %923 = vmatprep.subr.bf16.mxu0 0
        %924 = vmatpush2.bf16.msra.mxu0 0
        %925 = vmatprep.subr.bf16.mxu0 0
        %926 = vmatpush2.bf16.msra.mxu0 0
        %927 = vmatprep.mubr.bf16.mxu0 0
        %928 = vmatmul.mubr.bf16.gmra.mxu0 %v884
        %v929 = vpop.f32.mrf.mxu0
        %v930 = vadd.f32 0.0, %v929
        %v931 = vpop.f32.mrf.mxu0
        %v932 = vadd.f32 0.0, %v931
        %v933 = vpop.f32.mrf.mxu0
        %v934 = vpop.f32.mrf.mxu0
        %935 = vdwg.mxu0
        %936 = vmatprep.subr.bf16.mxu0 0
        %937 = vmatpush1.bf16.msra.mxu0 0
        %938 = vmatprep.subr.bf16.mxu0 0
        %939 = vmatpush1.bf16.msra.mxu0 0
        %940 = vmatprep.subr.bf16.mxu0 0
        %941 = vmatpush1.bf16.msra.mxu0 0
        %942 = vmatprep.subr.bf16.mxu0 0
        %943 = vmatpush1.bf16.msra.mxu0 0
        %944 = vmatprep.subr.bf16.mxu0 0
        %945 = vmatpush1.bf16.msra.mxu0 0
        %946 = vmatprep.subr.bf16.mxu0 0
        %947 = vmatpush1.bf16.msra.mxu0 0
        %948 = vmatprep.subr.bf16.mxu0 0
        %949 = vmatpush1.bf16.msra.mxu0 0
        %950 = vmatprep.subr.bf16.mxu0 0
        %951 = vmatpush1.bf16.msra.mxu0 %v893
        %952 = vmatprep.subr.bf16.mxu0 0
        %953 = vmatpush2.bf16.msra.mxu0 0
        %954 = vmatprep.subr.bf16.mxu0 0
        %955 = vmatpush2.bf16.msra.mxu0 0
        %956 = vmatprep.subr.bf16.mxu0 0
        %957 = vmatpush2.bf16.msra.mxu0 0
        %958 = vmatprep.subr.bf16.mxu0 0
        %959 = vmatpush2.bf16.msra.mxu0 0
        %960 = vmatprep.subr.bf16.mxu0 0
        %961 = vmatpush2.bf16.msra.mxu0 0
        %962 = vmatprep.subr.bf16.mxu0 0
        %963 = vmatpush2.bf16.msra.mxu0 0
        %964 = vmatprep.subr.bf16.mxu0 0
        %965 = vmatpush2.bf16.msra.mxu0 0
        %966 = vmatprep.subr.bf16.mxu0 0
        %967 = vmatpush2.bf16.msra.mxu0 0
        %968 = vmatprep.mubr.bf16.mxu0 0
        %969 = vmatmul.mubr.bf16.gmra.mxu0 %v884
        %v970 = vpop.f32.mrf.mxu0
        %v971 = vadd.f32 0.0, %v970
        %v972 = vpop.f32.mrf.mxu0
        %v973 = vpop.f32.mrf.mxu0
        %v974 = vpop.f32.mrf.mxu0
        %975 = vdwg.mxu0
        %v976 = vadd.f32 %v866, %v930
        %v977 = vadd.f32 %v867, %v932
        %v978 = vadd.f32 %v868, %v971
        %s979 = scalar_lea.vmem %s1, 14
        %v980 = vld [vmem:[%s979] sm:$0x3]
        %981 = vrot.lane.b32.xlu0 %v218, 91
        %v982 = vpop.permute.xlu0 %981
        %983 = vrot.lane.b32.xlu0 %v219, 91
        %v984 = vpop.permute.xlu0 %983
        %985 = vrot.lane.b32.xlu0 %v220, 91
        %v986 = vpop.permute.xlu0 %985
        %987 = vrot.lane.b32.xlu0 %v221, 91
        %v988 = vpop.permute.xlu0 %987
        %vm989 = vcmask 744448
        %v990 = vsel %vm989, %v982, %v984
        %v991 = vsel %vm989, %v984, %v986
        %v992 = vsel %vm989, %v986, %v988
        %v994 = vsel %vm241, %v980, 0
        %v997 = vsel %vm245, %v990, 0
        %v1000 = vsel %vm245, %v991, 0
        %v1003 = vsel %vm245, %v992, 0
        %1005 = vmatprep.subr.bf16.mxu0 0
        %1006 = vmatpush1.bf16.msra.mxu0 0
        %1007 = vmatprep.subr.bf16.mxu0 0
        %1008 = vmatpush1.bf16.msra.mxu0 0
        %1009 = vmatprep.subr.bf16.mxu0 0
        %1010 = vmatpush1.bf16.msra.mxu0 0
        %1011 = vmatprep.subr.bf16.mxu0 0
        %1012 = vmatpush1.bf16.msra.mxu0 0
        %1013 = vmatprep.subr.bf16.mxu0 0
        %1014 = vmatpush1.bf16.msra.mxu0 0
        %1015 = vmatprep.subr.bf16.mxu0 0
        %1016 = vmatpush1.bf16.msra.mxu0 0
        %1017 = vmatprep.subr.bf16.mxu0 0
        %1018 = vmatpush1.bf16.msra.mxu0 0
        %1019 = vmatprep.subr.bf16.mxu0 %v1000
        %1020 = vmatpush1.bf16.msra.mxu0 %v997
        %1021 = vmatprep.subr.bf16.mxu0 0
        %1022 = vmatpush2.bf16.msra.mxu0 0
        %1023 = vmatprep.subr.bf16.mxu0 0
        %1024 = vmatpush2.bf16.msra.mxu0 0
        %1025 = vmatprep.subr.bf16.mxu0 0
        %1026 = vmatpush2.bf16.msra.mxu0 0
        %1027 = vmatprep.subr.bf16.mxu0 0
        %1028 = vmatpush2.bf16.msra.mxu0 0
        %1029 = vmatprep.subr.bf16.mxu0 0
        %1030 = vmatpush2.bf16.msra.mxu0 0
        %1031 = vmatprep.subr.bf16.mxu0 0
        %1032 = vmatpush2.bf16.msra.mxu0 0
        %1033 = vmatprep.subr.bf16.mxu0 0
        %1034 = vmatpush2.bf16.msra.mxu0 0
        %1035 = vmatprep.subr.bf16.mxu0 0
        %1036 = vmatpush2.bf16.msra.mxu0 0
        %1037 = vmatprep.mubr.bf16.mxu0 0
        %1038 = vmatmul.mubr.bf16.gmra.mxu0 %v994
        %v1039 = vpop.f32.mrf.mxu0
        %v1040 = vadd.f32 0.0, %v1039
        %v1041 = vpop.f32.mrf.mxu0
        %v1042 = vadd.f32 0.0, %v1041
        %v1043 = vpop.f32.mrf.mxu0
        %v1044 = vpop.f32.mrf.mxu0
        %1045 = vdwg.mxu0
        %1046 = vmatprep.subr.bf16.mxu0 0
        %1047 = vmatpush1.bf16.msra.mxu0 0
        %1048 = vmatprep.subr.bf16.mxu0 0
        %1049 = vmatpush1.bf16.msra.mxu0 0
        %1050 = vmatprep.subr.bf16.mxu0 0
        %1051 = vmatpush1.bf16.msra.mxu0 0
        %1052 = vmatprep.subr.bf16.mxu0 0
        %1053 = vmatpush1.bf16.msra.mxu0 0
        %1054 = vmatprep.subr.bf16.mxu0 0
        %1055 = vmatpush1.bf16.msra.mxu0 0
        %1056 = vmatprep.subr.bf16.mxu0 0
        %1057 = vmatpush1.bf16.msra.mxu0 0
        %1058 = vmatprep.subr.bf16.mxu0 0
        %1059 = vmatpush1.bf16.msra.mxu0 0
        %1060 = vmatprep.subr.bf16.mxu0 0
        %1061 = vmatpush1.bf16.msra.mxu0 %v1003
        %1062 = vmatprep.subr.bf16.mxu0 0
        %1063 = vmatpush2.bf16.msra.mxu0 0
        %1064 = vmatprep.subr.bf16.mxu0 0
        %1065 = vmatpush2.bf16.msra.mxu0 0
        %1066 = vmatprep.subr.bf16.mxu0 0
        %1067 = vmatpush2.bf16.msra.mxu0 0
        %1068 = vmatprep.subr.bf16.mxu0 0
        %1069 = vmatpush2.bf16.msra.mxu0 0
        %1070 = vmatprep.subr.bf16.mxu0 0
        %1071 = vmatpush2.bf16.msra.mxu0 0
        %1072 = vmatprep.subr.bf16.mxu0 0
        %1073 = vmatpush2.bf16.msra.mxu0 0
        %1074 = vmatprep.subr.bf16.mxu0 0
        %1075 = vmatpush2.bf16.msra.mxu0 0
        %1076 = vmatprep.subr.bf16.mxu0 0
        %1077 = vmatpush2.bf16.msra.mxu0 0
        %1078 = vmatprep.mubr.bf16.mxu0 0
        %1079 = vmatmul.mubr.bf16.gmra.mxu0 %v994
        %v1080 = vpop.f32.mrf.mxu0
        %v1081 = vadd.f32 0.0, %v1080
        %v1082 = vpop.f32.mrf.mxu0
        %v1083 = vpop.f32.mrf.mxu0
        %v1084 = vpop.f32.mrf.mxu0
        %1085 = vdwg.mxu0
        %v1086 = vadd.f32 %v976, %v1040
        %v1087 = vadd.f32 %v977, %v1042
        %v1088 = vadd.f32 %v978, %v1081
        %s1089 = scalar_lea.vmem %s1, 16
        %v1090 = vld [vmem:[%s1089] sm:$0x3]
        %1091 = vrot.lane.b32.xlu0 %v218, 90
        %v1092 = vpop.permute.xlu0 %1091
        %1093 = vrot.lane.b32.xlu0 %v219, 90
        %v1094 = vpop.permute.xlu0 %1093
        %1095 = vrot.lane.b32.xlu0 %v220, 90
        %v1096 = vpop.permute.xlu0 %1095
        %1097 = vrot.lane.b32.xlu0 %v221, 90
        %v1098 = vpop.permute.xlu0 %1097
        %vm1099 = vcmask 736256
        %v1100 = vsel %vm1099, %v1092, %v1094
        %v1101 = vsel %vm1099, %v1094, %v1096
        %v1102 = vsel %vm1099, %v1096, %v1098
        %v1104 = vsel %vm241, %v1090, 0
        %v1107 = vsel %vm245, %v1100, 0
        %v1110 = vsel %vm245, %v1101, 0
        %v1113 = vsel %vm245, %v1102, 0
        %1115 = vmatprep.subr.bf16.mxu0 0
        %1116 = vmatpush1.bf16.msra.mxu0 0
        %1117 = vmatprep.subr.bf16.mxu0 0
        %1118 = vmatpush1.bf16.msra.mxu0 0
        %1119 = vmatprep.subr.bf16.mxu0 0
        %1120 = vmatpush1.bf16.msra.mxu0 0
        %1121 = vmatprep.subr.bf16.mxu0 0
        %1122 = vmatpush1.bf16.msra.mxu0 0
        %1123 = vmatprep.subr.bf16.mxu0 0
        %1124 = vmatpush1.bf16.msra.mxu0 0
        %1125 = vmatprep.subr.bf16.mxu0 0
        %1126 = vmatpush1.bf16.msra.mxu0 0
        %1127 = vmatprep.subr.bf16.mxu0 0
        %1128 = vmatpush1.bf16.msra.mxu0 0
        %1129 = vmatprep.subr.bf16.mxu0 %v1110
        %1130 = vmatpush1.bf16.msra.mxu0 %v1107
        %1131 = vmatprep.subr.bf16.mxu0 0
        %1132 = vmatpush2.bf16.msra.mxu0 0
        %1133 = vmatprep.subr.bf16.mxu0 0
        %1134 = vmatpush2.bf16.msra.mxu0 0
        %1135 = vmatprep.subr.bf16.mxu0 0
        %1136 = vmatpush2.bf16.msra.mxu0 0
        %1137 = vmatprep.subr.bf16.mxu0 0
        %1138 = vmatpush2.bf16.msra.mxu0 0
        %1139 = vmatprep.subr.bf16.mxu0 0
        %1140 = vmatpush2.bf16.msra.mxu0 0
        %1141 = vmatprep.subr.bf16.mxu0 0
        %1142 = vmatpush2.bf16.msra.mxu0 0
        %1143 = vmatprep.subr.bf16.mxu0 0
        %1144 = vmatpush2.bf16.msra.mxu0 0
        %1145 = vmatprep.subr.bf16.mxu0 0
        %1146 = vmatpush2.bf16.msra.mxu0 0
        %1147 = vmatprep.mubr.bf16.mxu0 0
        %1148 = vmatmul.mubr.bf16.gmra.mxu0 %v1104
        %v1149 = vpop.f32.mrf.mxu0
        %v1150 = vadd.f32 0.0, %v1149
        %v1151 = vpop.f32.mrf.mxu0
        %v1152 = vadd.f32 0.0, %v1151
        %v1153 = vpop.f32.mrf.mxu0
        %v1154 = vpop.f32.mrf.mxu0
        %1155 = vdwg.mxu0
        %1156 = vmatprep.subr.bf16.mxu0 0
        %1157 = vmatpush1.bf16.msra.mxu0 0
        %1158 = vmatprep.subr.bf16.mxu0 0
        %1159 = vmatpush1.bf16.msra.mxu0 0
        %1160 = vmatprep.subr.bf16.mxu0 0
        %1161 = vmatpush1.bf16.msra.mxu0 0
        %1162 = vmatprep.subr.bf16.mxu0 0
        %1163 = vmatpush1.bf16.msra.mxu0 0
        %1164 = vmatprep.subr.bf16.mxu0 0
        %1165 = vmatpush1.bf16.msra.mxu0 0
        %1166 = vmatprep.subr.bf16.mxu0 0
        %1167 = vmatpush1.bf16.msra.mxu0 0
        %1168 = vmatprep.subr.bf16.mxu0 0
        %1169 = vmatpush1.bf16.msra.mxu0 0
        %1170 = vmatprep.subr.bf16.mxu0 0
        %1171 = vmatpush1.bf16.msra.mxu0 %v1113
        %1172 = vmatprep.subr.bf16.mxu0 0
        %1173 = vmatpush2.bf16.msra.mxu0 0
        %1174 = vmatprep.subr.bf16.mxu0 0
        %1175 = vmatpush2.bf16.msra.mxu0 0
        %1176 = vmatprep.subr.bf16.mxu0 0
        %1177 = vmatpush2.bf16.msra.mxu0 0
        %1178 = vmatprep.subr.bf16.mxu0 0
        %1179 = vmatpush2.bf16.msra.mxu0 0
        %1180 = vmatprep.subr.bf16.mxu0 0
        %1181 = vmatpush2.bf16.msra.mxu0 0
        %1182 = vmatprep.subr.bf16.mxu0 0
        %1183 = vmatpush2.bf16.msra.mxu0 0
        %1184 = vmatprep.subr.bf16.mxu0 0
        %1185 = vmatpush2.bf16.msra.mxu0 0
        %1186 = vmatprep.subr.bf16.mxu0 0
        %1187 = vmatpush2.bf16.msra.mxu0 0
        %1188 = vmatprep.mubr.bf16.mxu0 0
        %1189 = vmatmul.mubr.bf16.gmra.mxu0 %v1104
        %v1190 = vpop.f32.mrf.mxu0
        %v1191 = vadd.f32 0.0, %v1190
        %v1192 = vpop.f32.mrf.mxu0
        %v1193 = vpop.f32.mrf.mxu0
        %v1194 = vpop.f32.mrf.mxu0
        %1195 = vdwg.mxu0
        %v1196 = vadd.f32 %v1086, %v1150
        %v1197 = vadd.f32 %v1087, %v1152
        %v1198 = vadd.f32 %v1088, %v1191
        %v1199 = vsel %vm200, 1, 0
        %v1200 = vlaneseq
        %v1201 = vshrl.u32 %v1200, 7
        %v1202 = vsub.s32 0, %v1201
        %v1203 = vrot.slane %v1199, %v1202
        %v1204 = vlaneseq
        %v1205 = vshrl.u32 %v1204, 7
        %v1206 = vsub.s32 1, %v1205
        %v1207 = vrot.slane %v1199, %v1206
        %v1208 = vlaneseq
        %v1209 = vshrl.u32 %v1208, 7
        %v1210 = vsub.s32 2, %v1209
        %v1211 = vrot.slane %v1199, %v1210
        %vm1212 = vcmp.eq.s32.totalorder %v1203, 1
        %vm1213 = vcmp.eq.s32.totalorder %v1207, 1
        %vm1214 = vcmp.eq.s32.totalorder %v1211, 1
        %v1215 = vsel %vm1212, %v1196, 0.0
        %v1216 = vsel %vm1213, %v1197, 0.0
        %v1217 = vsel %vm1214, %v1198, 0.0
        %vm1218 = vcmask 1043456
        %v1219 = vsel %vm1218, %v1215, 0.0
        %v1220 = vsel %vm1218, %v1216, 0.0
        %v1221 = vadd.f32 %v1219, %v1220
        %v1222 = vsel %vm1218, %v1217, 0.0
        %v1223 = vadd.f32 %v1221, %v1222
        %1224 = vadd.xlane.f32.xlu0 %v1223
        %v1225 = vpop.xlane.xlu0 %1224
        %v1226 = vmul.f32 %v1225, 0.00390625
        %v1227 = vmul.f32 %v1215, %v1215
        %v1228 = vmul.f32 %v1216, %v1216
        %v1229 = vmul.f32 %v1217, %v1217
        %v1230 = vsel %vm1218, %v1227, 0.0
        %v1231 = vsel %vm1218, %v1228, 0.0
        %v1232 = vadd.f32 %v1230, %v1231
        %v1233 = vsel %vm1218, %v1229, 0.0
        %v1234 = vadd.f32 %v1232, %v1233
        %1235 = vadd.xlane.f32.xlu0 %v1234
        %v1236 = vpop.xlane.xlu0 %1235
        %v1237 = vmul.f32 %v1236, 0.00390625
        %v1238 = vmul.f32 %v1226, %v1226
        %v1239 = vsub.f32 %v1237, %v1238
        %v1240 = vmax.f32 %v1239, 0.0
        %v1241 = vsub.f32 %v1215, %v1226
        %v1242 = vsub.f32 %v1216, %v1226
        %v1243 = vsub.f32 %v1217, %v1226
        %v1244 = vadd.f32 %v1240, 1e-05
        %v1245 = vrsqrt.pop %v1244
        %v1246 = vmul.f32 %v1241, %v1245
        %v1247 = vmul.f32 %v1242, %v1245
        %v1248 = vmul.f32 %v1243, %v1245
        %v1249 = vmax.f32 %v1246, 0.0
        %v1250 = vmax.f32 %v1247, 0.0
        %v1251 = vmax.f32 %v1248, 0.0
        %1255 = vrot.lane.b32.xlu0 %v1249, 19
        %v1256 = vpop.permute.xlu0 %1255
        %1257 = vrot.lane.b32.xlu0 %v1250, 19
        %v1258 = vpop.permute.xlu0 %1257
        %1259 = vrot.lane.b32.xlu0 %v1251, 19
        %v1260 = vpop.permute.xlu0 %1259
        %vm1261 = vcmask 154624
        %v1262 = vsel %vm1261, %v1256, %v1258
        %v1263 = vsel %vm1261, %v1258, %v1260
        %v1268 = vsel %vm1261, 0.0, %v1256
        %v1269 = vsel %vm1261, %v1260, 0.0
        %1272 = vrot.lane.b32.xlu0 %v1268, 126
        %v1273 = vpop.permute.xlu0 %1272
        %1274 = vrot.lane.b32.xlu0 %v1262, 126
        %v1275 = vpop.permute.xlu0 %1274
        %1276 = vrot.lane.b32.xlu0 %v1263, 126
        %v1277 = vpop.permute.xlu0 %1276
        %1278 = vrot.lane.b32.xlu0 %v1269, 126
        %v1279 = vpop.permute.xlu0 %1278
        %vm1280 = vcmask 1031168
        %v1281 = vsel %vm1280, %v1273, %v1275
        %v1282 = vsel %vm1280, %v1275, %v1277
        %v1283 = vsel %vm1280, %v1277, %v1279
        %v1289 = vsel %vm1280, %v1279, %v1273
        %v1290 = vsel %vm203, 1, 0
        %v1291 = vlaneseq
        %v1292 = vshrl.u32 %v1291, 7
        %v1293 = vsub.s32 0, %v1292
        %v1294 = vrot.slane %v1290, %v1293
        %v1295 = vlaneseq
        %v1296 = vshrl.u32 %v1295, 7
        %v1297 = vsub.s32 1, %v1296
        %v1298 = vrot.slane %v1290, %v1297
        %v1299 = vlaneseq
        %v1300 = vshrl.u32 %v1299, 7
        %v1301 = vsub.s32 2, %v1300
        %v1302 = vrot.slane %v1290, %v1301
        %v1303 = vlaneseq
        %v1304 = vshrl.u32 %v1303, 7
        %v1305 = vsub.s32 3, %v1304
        %v1306 = vrot.slane %v1290, %v1305
        %vm1307 = vcmp.eq.s32.totalorder %v1294, 1
        %vm1308 = vcmp.eq.s32.totalorder %v1298, 1
        %vm1309 = vcmp.eq.s32.totalorder %v1302, 1
        %vm1310 = vcmp.eq.s32.totalorder %v1306, 1
        %v1311 = vsel %vm1307, %v1281, %v1268
        %v1312 = vsel %vm1308, %v1282, %v1262
        %v1313 = vsel %vm1309, %v1283, %v1263
        %v1314 = vsel %vm1310, %v1289, %v1269
        %1316 = vrot.lane.b32.xlu0 %v1314, 2
        %v1317 = vpop.permute.xlu0 %1316
        %1322 = vrot.lane.b32.xlu0 %v1311, 2
        %v1323 = vpop.permute.xlu0 %1322
        %1324 = vrot.lane.b32.xlu0 %v1312, 2
        %v1325 = vpop.permute.xlu0 %1324
        %1326 = vrot.lane.b32.xlu0 %v1313, 2
        %v1327 = vpop.permute.xlu0 %1326
        %vm1328 = vcmask 15360
        %v1329 = vsel %vm1328, %v1323, %v1325
        %v1330 = vsel %vm1328, %v1325, %v1327
        %v1331 = vsel %vm1328, %v1327, %v1317
        %v1336 = vsel %vm1328, %v1317, %v1323
        %v1337 = vsel %vm206, 1, 0
        %v1338 = vlaneseq
        %v1339 = vshrl.u32 %v1338, 7
        %v1340 = vsub.s32 0, %v1339
        %v1341 = vrot.slane %v1337, %v1340
        %v1342 = vlaneseq
        %v1343 = vshrl.u32 %v1342, 7
        %v1344 = vsub.s32 1, %v1343
        %v1345 = vrot.slane %v1337, %v1344
        %v1346 = vlaneseq
        %v1347 = vshrl.u32 %v1346, 7
        %v1348 = vsub.s32 2, %v1347
        %v1349 = vrot.slane %v1337, %v1348
        %v1350 = vlaneseq
        %v1351 = vshrl.u32 %v1350, 7
        %v1352 = vsub.s32 3, %v1351
        %v1353 = vrot.slane %v1337, %v1352
        %vm1354 = vcmp.eq.s32.totalorder %v1341, 1
        %vm1355 = vcmp.eq.s32.totalorder %v1345, 1
        %vm1356 = vcmp.eq.s32.totalorder %v1349, 1
        %vm1357 = vcmp.eq.s32.totalorder %v1353, 1
        %v1358 = vsel %vm1354, %v1336, %v1311
        %v1359 = vsel %vm1355, %v1329, %v1312
        %v1360 = vsel %vm1356, %v1330, %v1313
        %v1361 = vsel %vm1357, %v1331, %v1314
        %1366 = vrot.lane.b32.xlu0 %v1358, 92
        %v1367 = vpop.permute.xlu0 %1366
        %1368 = vrot.lane.b32.xlu0 %v1359, 92
        %v1369 = vpop.permute.xlu0 %1368
        %1370 = vrot.lane.b32.xlu0 %v1360, 92
        %v1371 = vpop.permute.xlu0 %1370
        %1372 = vrot.lane.b32.xlu0 %v1361, 92
        %v1373 = vpop.permute.xlu0 %1372
        %vm1374 = vcmask 752640
        %v1375 = vsel %vm1374, %v1367, %v1369
        %v1376 = vsel %vm1374, %v1369, %v1371
        %v1377 = vsel %vm1374, %v1371, %v1373
        %v1383 = vsel %vm1374, %v1373, %v1367
        %v1384 = vsel %vm209, 1, 0
        %v1385 = vlaneseq
        %v1386 = vshrl.u32 %v1385, 7
        %v1387 = vsub.s32 0, %v1386
        %v1388 = vrot.slane %v1384, %v1387
        %v1389 = vlaneseq
        %v1390 = vshrl.u32 %v1389, 7
        %v1391 = vsub.s32 1, %v1390
        %v1392 = vrot.slane %v1384, %v1391
        %v1393 = vlaneseq
        %v1394 = vshrl.u32 %v1393, 7
        %v1395 = vsub.s32 2, %v1394
        %v1396 = vrot.slane %v1384, %v1395
        %v1397 = vlaneseq
        %v1398 = vshrl.u32 %v1397, 7
        %v1399 = vsub.s32 3, %v1398
        %v1400 = vrot.slane %v1384, %v1399
        %vm1401 = vcmp.eq.s32.totalorder %v1388, 1
        %vm1402 = vcmp.eq.s32.totalorder %v1392, 1
        %vm1403 = vcmp.eq.s32.totalorder %v1396, 1
        %vm1404 = vcmp.eq.s32.totalorder %v1400, 1
        %v1405 = vsel %vm1401, %v1375, %v1358
        %v1406 = vsel %vm1402, %v1376, %v1359
        %v1407 = vsel %vm1403, %v1377, %v1360
        %v1408 = vsel %vm1404, %v1383, %v1361
        %1410 = vrot.lane.b32.xlu0 %v1408, 36
        %v1411 = vpop.permute.xlu0 %1410
        %1416 = vrot.lane.b32.xlu0 %v1405, 36
        %v1417 = vpop.permute.xlu0 %1416
        %1418 = vrot.lane.b32.xlu0 %v1406, 36
        %v1419 = vpop.permute.xlu0 %1418
        %1420 = vrot.lane.b32.xlu0 %v1407, 36
        %v1421 = vpop.permute.xlu0 %1420
        %vm1422 = vcmask 293888
        %v1423 = vsel %vm1422, %v1417, %v1419
        %v1424 = vsel %vm1422, %v1419, %v1421
        %v1425 = vsel %vm1422, %v1421, %v1411
        %v1430 = vsel %vm1422, %v1411, %v1417
        %v1431 = vsel %vm212, 1, 0
        %v1432 = vlaneseq
        %v1433 = vshrl.u32 %v1432, 7
        %v1434 = vsub.s32 0, %v1433
        %v1435 = vrot.slane %v1431, %v1434
        %v1436 = vlaneseq
        %v1437 = vshrl.u32 %v1436, 7
        %v1438 = vsub.s32 1, %v1437
        %v1439 = vrot.slane %v1431, %v1438
        %v1440 = vlaneseq
        %v1441 = vshrl.u32 %v1440, 7
        %v1442 = vsub.s32 2, %v1441
        %v1443 = vrot.slane %v1431, %v1442
        %v1444 = vlaneseq
        %v1445 = vshrl.u32 %v1444, 7
        %v1446 = vsub.s32 3, %v1445
        %v1447 = vrot.slane %v1431, %v1446
        %vm1448 = vcmp.eq.s32.totalorder %v1435, 1
        %vm1449 = vcmp.eq.s32.totalorder %v1439, 1
        %vm1450 = vcmp.eq.s32.totalorder %v1443, 1
        %vm1451 = vcmp.eq.s32.totalorder %v1447, 1
        %v1452 = vsel %vm1448, %v1430, %v1405
        %v1453 = vsel %vm1449, %v1423, %v1406
        %v1454 = vsel %vm1450, %v1424, %v1407
        %v1455 = vsel %vm1451, %v1425, %v1408
        %v1456 = vpack.c.bf16 %v1452, %v1452
        %v1457 = vpack.c.bf16 %v1453, %v1453
        %v1458 = vpack.c.bf16 %v1454, %v1454
        %v1459 = vpack.c.bf16 %v1455, %v1455
        %v1460 = vld [vmem:[%s2] sm:$0x3]
        %s1461 = scalar_lea.vmem %s2, 2
        %v1462 = vld [vmem:[%s1461] sm:$0x3]
        %1467 = vrot.lane.b32.xlu0 %v1456, 127
        %v1468 = vpop.permute.xlu0 %1467
        %1469 = vrot.lane.b32.xlu0 %v1457, 127
        %v1470 = vpop.permute.xlu0 %1469
        %1471 = vrot.lane.b32.xlu0 %v1458, 127
        %v1472 = vpop.permute.xlu0 %1471
        %1473 = vrot.lane.b32.xlu0 %v1459, 127
        %v1474 = vpop.permute.xlu0 %1473
        %v1475 = vsel %vm237, %v1468, %v1470
        %v1476 = vsel %vm237, %v1470, %v1472
        %v1477 = vsel %vm237, %v1472, %v1474
        %v1479 = vsel %vm241, %v1462, 0
        %v1482 = vsel %vm245, %v1475, 0
        %v1485 = vsel %vm245, %v1476, 0
        %v1488 = vsel %vm245, %v1477, 0
        %1490 = vmatprep.subr.bf16.mxu0 0
        %1491 = vmatpush1.bf16.msra.mxu0 0
        %1492 = vmatprep.subr.bf16.mxu0 0
        %1493 = vmatpush1.bf16.msra.mxu0 0
        %1494 = vmatprep.subr.bf16.mxu0 0
        %1495 = vmatpush1.bf16.msra.mxu0 0
        %1496 = vmatprep.subr.bf16.mxu0 0
        %1497 = vmatpush1.bf16.msra.mxu0 0
        %1498 = vmatprep.subr.bf16.mxu0 0
        %1499 = vmatpush1.bf16.msra.mxu0 0
        %1500 = vmatprep.subr.bf16.mxu0 0
        %1501 = vmatpush1.bf16.msra.mxu0 0
        %1502 = vmatprep.subr.bf16.mxu0 0
        %1503 = vmatpush1.bf16.msra.mxu0 0
        %1504 = vmatprep.subr.bf16.mxu0 %v1485
        %1505 = vmatpush1.bf16.msra.mxu0 %v1482
        %1506 = vmatprep.subr.bf16.mxu0 0
        %1507 = vmatpush2.bf16.msra.mxu0 0
        %1508 = vmatprep.subr.bf16.mxu0 0
        %1509 = vmatpush2.bf16.msra.mxu0 0
        %1510 = vmatprep.subr.bf16.mxu0 0
        %1511 = vmatpush2.bf16.msra.mxu0 0
        %1512 = vmatprep.subr.bf16.mxu0 0
        %1513 = vmatpush2.bf16.msra.mxu0 0
        %1514 = vmatprep.subr.bf16.mxu0 0
        %1515 = vmatpush2.bf16.msra.mxu0 0
        %1516 = vmatprep.subr.bf16.mxu0 0
        %1517 = vmatpush2.bf16.msra.mxu0 0
        %1518 = vmatprep.subr.bf16.mxu0 0
        %1519 = vmatpush2.bf16.msra.mxu0 0
        %1520 = vmatprep.subr.bf16.mxu0 0
        %1521 = vmatpush2.bf16.msra.mxu0 0
        %1522 = vmatprep.mubr.bf16.mxu0 0
        %1523 = vmatmul.mubr.bf16.gmra.mxu0 %v1479
        %v1524 = vpop.f32.mrf.mxu0
        %v1525 = vadd.f32 0.0, %v1524
        %v1526 = vpop.f32.mrf.mxu0
        %v1527 = vadd.f32 0.0, %v1526
        %v1528 = vpop.f32.mrf.mxu0
        %v1529 = vpop.f32.mrf.mxu0
        %1530 = vdwg.mxu0
        %1531 = vmatprep.subr.bf16.mxu0 0
        %1532 = vmatpush1.bf16.msra.mxu0 0
        %1533 = vmatprep.subr.bf16.mxu0 0
        %1534 = vmatpush1.bf16.msra.mxu0 0
        %1535 = vmatprep.subr.bf16.mxu0 0
        %1536 = vmatpush1.bf16.msra.mxu0 0
        %1537 = vmatprep.subr.bf16.mxu0 0
        %1538 = vmatpush1.bf16.msra.mxu0 0
        %1539 = vmatprep.subr.bf16.mxu0 0
        %1540 = vmatpush1.bf16.msra.mxu0 0
        %1541 = vmatprep.subr.bf16.mxu0 0
        %1542 = vmatpush1.bf16.msra.mxu0 0
        %1543 = vmatprep.subr.bf16.mxu0 0
        %1544 = vmatpush1.bf16.msra.mxu0 0
        %1545 = vmatprep.subr.bf16.mxu0 0
        %1546 = vmatpush1.bf16.msra.mxu0 %v1488
        %1547 = vmatprep.subr.bf16.mxu0 0
        %1548 = vmatpush2.bf16.msra.mxu0 0
        %1549 = vmatprep.subr.bf16.mxu0 0
        %1550 = vmatpush2.bf16.msra.mxu0 0
        %1551 = vmatprep.subr.bf16.mxu0 0
        %1552 = vmatpush2.bf16.msra.mxu0 0
        %1553 = vmatprep.subr.bf16.mxu0 0
        %1554 = vmatpush2.bf16.msra.mxu0 0
        %1555 = vmatprep.subr.bf16.mxu0 0
        %1556 = vmatpush2.bf16.msra.mxu0 0
        %1557 = vmatprep.subr.bf16.mxu0 0
        %1558 = vmatpush2.bf16.msra.mxu0 0
        %1559 = vmatprep.subr.bf16.mxu0 0
        %1560 = vmatpush2.bf16.msra.mxu0 0
        %1561 = vmatprep.subr.bf16.mxu0 0
        %1562 = vmatpush2.bf16.msra.mxu0 0
        %1563 = vmatprep.mubr.bf16.mxu0 0
        %1564 = vmatmul.mubr.bf16.gmra.mxu0 %v1479
        %v1565 = vpop.f32.mrf.mxu0
        %v1566 = vadd.f32 0.0, %v1565
        %v1567 = vpop.f32.mrf.mxu0
        %v1568 = vpop.f32.mrf.mxu0
        %v1569 = vpop.f32.mrf.mxu0
        %1570 = vdwg.mxu0
        %v1572 = vsel %vm241, %v1460, 0
        %v1575 = vsel %vm245, %v1456, 0
        %v1578 = vsel %vm245, %v1457, 0
        %v1581 = vsel %vm245, %v1458, 0
        %1583 = vmatprep.subr.bf16.mxu0 0
        %1584 = vmatpush1.bf16.msra.mxu0 0
        %1585 = vmatprep.subr.bf16.mxu0 0
        %1586 = vmatpush1.bf16.msra.mxu0 0
        %1587 = vmatprep.subr.bf16.mxu0 0
        %1588 = vmatpush1.bf16.msra.mxu0 0
        %1589 = vmatprep.subr.bf16.mxu0 0
        %1590 = vmatpush1.bf16.msra.mxu0 0
        %1591 = vmatprep.subr.bf16.mxu0 0
        %1592 = vmatpush1.bf16.msra.mxu0 0
        %1593 = vmatprep.subr.bf16.mxu0 0
        %1594 = vmatpush1.bf16.msra.mxu0 0
        %1595 = vmatprep.subr.bf16.mxu0 0
        %1596 = vmatpush1.bf16.msra.mxu0 0
        %1597 = vmatprep.subr.bf16.mxu0 %v1578
        %1598 = vmatpush1.bf16.msra.mxu0 %v1575
        %1599 = vmatprep.subr.bf16.mxu0 0
        %1600 = vmatpush2.bf16.msra.mxu0 0
        %1601 = vmatprep.subr.bf16.mxu0 0
        %1602 = vmatpush2.bf16.msra.mxu0 0
        %1603 = vmatprep.subr.bf16.mxu0 0
        %1604 = vmatpush2.bf16.msra.mxu0 0
        %1605 = vmatprep.subr.bf16.mxu0 0
        %1606 = vmatpush2.bf16.msra.mxu0 0
        %1607 = vmatprep.subr.bf16.mxu0 0
        %1608 = vmatpush2.bf16.msra.mxu0 0
        %1609 = vmatprep.subr.bf16.mxu0 0
        %1610 = vmatpush2.bf16.msra.mxu0 0
        %1611 = vmatprep.subr.bf16.mxu0 0
        %1612 = vmatpush2.bf16.msra.mxu0 0
        %1613 = vmatprep.subr.bf16.mxu0 0
        %1614 = vmatpush2.bf16.msra.mxu0 0
        %1615 = vmatprep.mubr.bf16.mxu0 0
        %1616 = vmatmul.mubr.bf16.gmra.mxu0 %v1572
        %v1617 = vpop.f32.mrf.mxu0
        %v1618 = vadd.f32 %v1525, %v1617
        %v1619 = vpop.f32.mrf.mxu0
        %v1620 = vadd.f32 %v1527, %v1619
        %v1621 = vpop.f32.mrf.mxu0
        %v1622 = vpop.f32.mrf.mxu0
        %1623 = vdwg.mxu0
        %1624 = vmatprep.subr.bf16.mxu0 0
        %1625 = vmatpush1.bf16.msra.mxu0 0
        %1626 = vmatprep.subr.bf16.mxu0 0
        %1627 = vmatpush1.bf16.msra.mxu0 0
        %1628 = vmatprep.subr.bf16.mxu0 0
        %1629 = vmatpush1.bf16.msra.mxu0 0
        %1630 = vmatprep.subr.bf16.mxu0 0
        %1631 = vmatpush1.bf16.msra.mxu0 0
        %1632 = vmatprep.subr.bf16.mxu0 0
        %1633 = vmatpush1.bf16.msra.mxu0 0
        %1634 = vmatprep.subr.bf16.mxu0 0
        %1635 = vmatpush1.bf16.msra.mxu0 0
        %1636 = vmatprep.subr.bf16.mxu0 0
        %1637 = vmatpush1.bf16.msra.mxu0 0
        %1638 = vmatprep.subr.bf16.mxu0 0
        %1639 = vmatpush1.bf16.msra.mxu0 %v1581
        %1640 = vmatprep.subr.bf16.mxu0 0
        %1641 = vmatpush2.bf16.msra.mxu0 0
        %1642 = vmatprep.subr.bf16.mxu0 0
        %1643 = vmatpush2.bf16.msra.mxu0 0
        %1644 = vmatprep.subr.bf16.mxu0 0
        %1645 = vmatpush2.bf16.msra.mxu0 0
        %1646 = vmatprep.subr.bf16.mxu0 0
        %1647 = vmatpush2.bf16.msra.mxu0 0
        %1648 = vmatprep.subr.bf16.mxu0 0
        %1649 = vmatpush2.bf16.msra.mxu0 0
        %1650 = vmatprep.subr.bf16.mxu0 0
        %1651 = vmatpush2.bf16.msra.mxu0 0
        %1652 = vmatprep.subr.bf16.mxu0 0
        %1653 = vmatpush2.bf16.msra.mxu0 0
        %1654 = vmatprep.subr.bf16.mxu0 0
        %1655 = vmatpush2.bf16.msra.mxu0 0
        %1656 = vmatprep.mubr.bf16.mxu0 0
        %1657 = vmatmul.mubr.bf16.gmra.mxu0 %v1572
        %v1658 = vpop.f32.mrf.mxu0
        %v1659 = vadd.f32 %v1566, %v1658
        %v1660 = vpop.f32.mrf.mxu0
        %v1661 = vpop.f32.mrf.mxu0
        %v1662 = vpop.f32.mrf.mxu0
        %1663 = vdwg.mxu0
        %s1664 = scalar_lea.vmem %s2, 4
        %v1665 = vld [vmem:[%s1664] sm:$0x3]
        %1666 = vrot.lane.b32.xlu0 %v1456, 126
        %v1667 = vpop.permute.xlu0 %1666
        %1668 = vrot.lane.b32.xlu0 %v1457, 126
        %v1669 = vpop.permute.xlu0 %1668
        %1670 = vrot.lane.b32.xlu0 %v1458, 126
        %v1671 = vpop.permute.xlu0 %1670
        %1672 = vrot.lane.b32.xlu0 %v1459, 126
        %v1673 = vpop.permute.xlu0 %1672
        %v1674 = vsel %vm439, %v1667, %v1669
        %v1675 = vsel %vm439, %v1669, %v1671
        %v1676 = vsel %vm439, %v1671, %v1673
        %v1678 = vsel %vm241, %v1665, 0
        %v1681 = vsel %vm245, %v1674, 0
        %v1684 = vsel %vm245, %v1675, 0
        %v1687 = vsel %vm245, %v1676, 0
        %1689 = vmatprep.subr.bf16.mxu0 0
        %1690 = vmatpush1.bf16.msra.mxu0 0
        %1691 = vmatprep.subr.bf16.mxu0 0
        %1692 = vmatpush1.bf16.msra.mxu0 0
        %1693 = vmatprep.subr.bf16.mxu0 0
        %1694 = vmatpush1.bf16.msra.mxu0 0
        %1695 = vmatprep.subr.bf16.mxu0 0
        %1696 = vmatpush1.bf16.msra.mxu0 0
        %1697 = vmatprep.subr.bf16.mxu0 0
        %1698 = vmatpush1.bf16.msra.mxu0 0
        %1699 = vmatprep.subr.bf16.mxu0 0
        %1700 = vmatpush1.bf16.msra.mxu0 0
        %1701 = vmatprep.subr.bf16.mxu0 0
        %1702 = vmatpush1.bf16.msra.mxu0 0
        %1703 = vmatprep.subr.bf16.mxu0 %v1684
        %1704 = vmatpush1.bf16.msra.mxu0 %v1681
        %1705 = vmatprep.subr.bf16.mxu0 0
        %1706 = vmatpush2.bf16.msra.mxu0 0
        %1707 = vmatprep.subr.bf16.mxu0 0
        %1708 = vmatpush2.bf16.msra.mxu0 0
        %1709 = vmatprep.subr.bf16.mxu0 0
        %1710 = vmatpush2.bf16.msra.mxu0 0
        %1711 = vmatprep.subr.bf16.mxu0 0
        %1712 = vmatpush2.bf16.msra.mxu0 0
        %1713 = vmatprep.subr.bf16.mxu0 0
        %1714 = vmatpush2.bf16.msra.mxu0 0
        %1715 = vmatprep.subr.bf16.mxu0 0
        %1716 = vmatpush2.bf16.msra.mxu0 0
        %1717 = vmatprep.subr.bf16.mxu0 0
        %1718 = vmatpush2.bf16.msra.mxu0 0
        %1719 = vmatprep.subr.bf16.mxu0 0
        %1720 = vmatpush2.bf16.msra.mxu0 0
        %1721 = vmatprep.mubr.bf16.mxu0 0
        %1722 = vmatmul.mubr.bf16.gmra.mxu0 %v1678
        %v1723 = vpop.f32.mrf.mxu0
        %v1724 = vadd.f32 0.0, %v1723
        %v1725 = vpop.f32.mrf.mxu0
        %v1726 = vadd.f32 0.0, %v1725
        %v1727 = vpop.f32.mrf.mxu0
        %v1728 = vpop.f32.mrf.mxu0
        %1729 = vdwg.mxu0
        %1730 = vmatprep.subr.bf16.mxu0 0
        %1731 = vmatpush1.bf16.msra.mxu0 0
        %1732 = vmatprep.subr.bf16.mxu0 0
        %1733 = vmatpush1.bf16.msra.mxu0 0
        %1734 = vmatprep.subr.bf16.mxu0 0
        %1735 = vmatpush1.bf16.msra.mxu0 0
        %1736 = vmatprep.subr.bf16.mxu0 0
        %1737 = vmatpush1.bf16.msra.mxu0 0
        %1738 = vmatprep.subr.bf16.mxu0 0
        %1739 = vmatpush1.bf16.msra.mxu0 0
        %1740 = vmatprep.subr.bf16.mxu0 0
        %1741 = vmatpush1.bf16.msra.mxu0 0
        %1742 = vmatprep.subr.bf16.mxu0 0
        %1743 = vmatpush1.bf16.msra.mxu0 0
        %1744 = vmatprep.subr.bf16.mxu0 0
        %1745 = vmatpush1.bf16.msra.mxu0 %v1687
        %1746 = vmatprep.subr.bf16.mxu0 0
        %1747 = vmatpush2.bf16.msra.mxu0 0
        %1748 = vmatprep.subr.bf16.mxu0 0
        %1749 = vmatpush2.bf16.msra.mxu0 0
        %1750 = vmatprep.subr.bf16.mxu0 0
        %1751 = vmatpush2.bf16.msra.mxu0 0
        %1752 = vmatprep.subr.bf16.mxu0 0
        %1753 = vmatpush2.bf16.msra.mxu0 0
        %1754 = vmatprep.subr.bf16.mxu0 0
        %1755 = vmatpush2.bf16.msra.mxu0 0
        %1756 = vmatprep.subr.bf16.mxu0 0
        %1757 = vmatpush2.bf16.msra.mxu0 0
        %1758 = vmatprep.subr.bf16.mxu0 0
        %1759 = vmatpush2.bf16.msra.mxu0 0
        %1760 = vmatprep.subr.bf16.mxu0 0
        %1761 = vmatpush2.bf16.msra.mxu0 0
        %1762 = vmatprep.mubr.bf16.mxu0 0
        %1763 = vmatmul.mubr.bf16.gmra.mxu0 %v1678
        %v1764 = vpop.f32.mrf.mxu0
        %v1765 = vadd.f32 0.0, %v1764
        %v1766 = vpop.f32.mrf.mxu0
        %v1767 = vpop.f32.mrf.mxu0
        %v1768 = vpop.f32.mrf.mxu0
        %1769 = vdwg.mxu0
        %v1770 = vadd.f32 %v1618, %v1724
        %v1771 = vadd.f32 %v1620, %v1726
        %v1772 = vadd.f32 %v1659, %v1765
        %s1773 = scalar_lea.vmem %s2, 6
        %v1774 = vld [vmem:[%s1773] sm:$0x3]
        %1775 = vrot.lane.b32.xlu0 %v1456, 110
        %v1776 = vpop.permute.xlu0 %1775
        %1777 = vrot.lane.b32.xlu0 %v1457, 110
        %v1778 = vpop.permute.xlu0 %1777
        %1779 = vrot.lane.b32.xlu0 %v1458, 110
        %v1780 = vpop.permute.xlu0 %1779
        %1781 = vrot.lane.b32.xlu0 %v1459, 110
        %v1782 = vpop.permute.xlu0 %1781
        %v1783 = vsel %vm549, %v1776, %v1778
        %v1784 = vsel %vm549, %v1778, %v1780
        %v1785 = vsel %vm549, %v1780, %v1782
        %v1787 = vsel %vm241, %v1774, 0
        %v1790 = vsel %vm245, %v1783, 0
        %v1793 = vsel %vm245, %v1784, 0
        %v1796 = vsel %vm245, %v1785, 0
        %1798 = vmatprep.subr.bf16.mxu0 0
        %1799 = vmatpush1.bf16.msra.mxu0 0
        %1800 = vmatprep.subr.bf16.mxu0 0
        %1801 = vmatpush1.bf16.msra.mxu0 0
        %1802 = vmatprep.subr.bf16.mxu0 0
        %1803 = vmatpush1.bf16.msra.mxu0 0
        %1804 = vmatprep.subr.bf16.mxu0 0
        %1805 = vmatpush1.bf16.msra.mxu0 0
        %1806 = vmatprep.subr.bf16.mxu0 0
        %1807 = vmatpush1.bf16.msra.mxu0 0
        %1808 = vmatprep.subr.bf16.mxu0 0
        %1809 = vmatpush1.bf16.msra.mxu0 0
        %1810 = vmatprep.subr.bf16.mxu0 0
        %1811 = vmatpush1.bf16.msra.mxu0 0
        %1812 = vmatprep.subr.bf16.mxu0 %v1793
        %1813 = vmatpush1.bf16.msra.mxu0 %v1790
        %1814 = vmatprep.subr.bf16.mxu0 0
        %1815 = vmatpush2.bf16.msra.mxu0 0
        %1816 = vmatprep.subr.bf16.mxu0 0
        %1817 = vmatpush2.bf16.msra.mxu0 0
        %1818 = vmatprep.subr.bf16.mxu0 0
        %1819 = vmatpush2.bf16.msra.mxu0 0
        %1820 = vmatprep.subr.bf16.mxu0 0
        %1821 = vmatpush2.bf16.msra.mxu0 0
        %1822 = vmatprep.subr.bf16.mxu0 0
        %1823 = vmatpush2.bf16.msra.mxu0 0
        %1824 = vmatprep.subr.bf16.mxu0 0
        %1825 = vmatpush2.bf16.msra.mxu0 0
        %1826 = vmatprep.subr.bf16.mxu0 0
        %1827 = vmatpush2.bf16.msra.mxu0 0
        %1828 = vmatprep.subr.bf16.mxu0 0
        %1829 = vmatpush2.bf16.msra.mxu0 0
        %1830 = vmatprep.mubr.bf16.mxu0 0
        %1831 = vmatmul.mubr.bf16.gmra.mxu0 %v1787
        %v1832 = vpop.f32.mrf.mxu0
        %v1833 = vadd.f32 0.0, %v1832
        %v1834 = vpop.f32.mrf.mxu0
        %v1835 = vadd.f32 0.0, %v1834
        %v1836 = vpop.f32.mrf.mxu0
        %v1837 = vpop.f32.mrf.mxu0
        %1838 = vdwg.mxu0
        %1839 = vmatprep.subr.bf16.mxu0 0
        %1840 = vmatpush1.bf16.msra.mxu0 0
        %1841 = vmatprep.subr.bf16.mxu0 0
        %1842 = vmatpush1.bf16.msra.mxu0 0
        %1843 = vmatprep.subr.bf16.mxu0 0
        %1844 = vmatpush1.bf16.msra.mxu0 0
        %1845 = vmatprep.subr.bf16.mxu0 0
        %1846 = vmatpush1.bf16.msra.mxu0 0
        %1847 = vmatprep.subr.bf16.mxu0 0
        %1848 = vmatpush1.bf16.msra.mxu0 0
        %1849 = vmatprep.subr.bf16.mxu0 0
        %1850 = vmatpush1.bf16.msra.mxu0 0
        %1851 = vmatprep.subr.bf16.mxu0 0
        %1852 = vmatpush1.bf16.msra.mxu0 0
        %1853 = vmatprep.subr.bf16.mxu0 0
        %1854 = vmatpush1.bf16.msra.mxu0 %v1796
        %1855 = vmatprep.subr.bf16.mxu0 0
        %1856 = vmatpush2.bf16.msra.mxu0 0
        %1857 = vmatprep.subr.bf16.mxu0 0
        %1858 = vmatpush2.bf16.msra.mxu0 0
        %1859 = vmatprep.subr.bf16.mxu0 0
        %1860 = vmatpush2.bf16.msra.mxu0 0
        %1861 = vmatprep.subr.bf16.mxu0 0
        %1862 = vmatpush2.bf16.msra.mxu0 0
        %1863 = vmatprep.subr.bf16.mxu0 0
        %1864 = vmatpush2.bf16.msra.mxu0 0
        %1865 = vmatprep.subr.bf16.mxu0 0
        %1866 = vmatpush2.bf16.msra.mxu0 0
        %1867 = vmatprep.subr.bf16.mxu0 0
        %1868 = vmatpush2.bf16.msra.mxu0 0
        %1869 = vmatprep.subr.bf16.mxu0 0
        %1870 = vmatpush2.bf16.msra.mxu0 0
        %1871 = vmatprep.mubr.bf16.mxu0 0
        %1872 = vmatmul.mubr.bf16.gmra.mxu0 %v1787
        %v1873 = vpop.f32.mrf.mxu0
        %v1874 = vadd.f32 0.0, %v1873
        %v1875 = vpop.f32.mrf.mxu0
        %v1876 = vpop.f32.mrf.mxu0
        %v1877 = vpop.f32.mrf.mxu0
        %1878 = vdwg.mxu0
        %v1879 = vadd.f32 %v1770, %v1833
        %v1880 = vadd.f32 %v1771, %v1835
        %v1881 = vadd.f32 %v1772, %v1874
        %s1882 = scalar_lea.vmem %s2, 8
        %v1883 = vld [vmem:[%s1882] sm:$0x3]
        %1884 = vrot.lane.b32.xlu0 %v1456, 109
        %v1885 = vpop.permute.xlu0 %1884
        %1886 = vrot.lane.b32.xlu0 %v1457, 109
        %v1887 = vpop.permute.xlu0 %1886
        %1888 = vrot.lane.b32.xlu0 %v1458, 109
        %v1889 = vpop.permute.xlu0 %1888
        %1890 = vrot.lane.b32.xlu0 %v1459, 109
        %v1891 = vpop.permute.xlu0 %1890
        %v1892 = vsel %vm659, %v1885, %v1887
        %v1893 = vsel %vm659, %v1887, %v1889
        %v1894 = vsel %vm659, %v1889, %v1891
        %v1896 = vsel %vm241, %v1883, 0
        %v1899 = vsel %vm245, %v1892, 0
        %v1902 = vsel %vm245, %v1893, 0
        %v1905 = vsel %vm245, %v1894, 0
        %1907 = vmatprep.subr.bf16.mxu0 0
        %1908 = vmatpush1.bf16.msra.mxu0 0
        %1909 = vmatprep.subr.bf16.mxu0 0
        %1910 = vmatpush1.bf16.msra.mxu0 0
        %1911 = vmatprep.subr.bf16.mxu0 0
        %1912 = vmatpush1.bf16.msra.mxu0 0
        %1913 = vmatprep.subr.bf16.mxu0 0
        %1914 = vmatpush1.bf16.msra.mxu0 0
        %1915 = vmatprep.subr.bf16.mxu0 0
        %1916 = vmatpush1.bf16.msra.mxu0 0
        %1917 = vmatprep.subr.bf16.mxu0 0
        %1918 = vmatpush1.bf16.msra.mxu0 0
        %1919 = vmatprep.subr.bf16.mxu0 0
        %1920 = vmatpush1.bf16.msra.mxu0 0
        %1921 = vmatprep.subr.bf16.mxu0 %v1902
        %1922 = vmatpush1.bf16.msra.mxu0 %v1899
        %1923 = vmatprep.subr.bf16.mxu0 0
        %1924 = vmatpush2.bf16.msra.mxu0 0
        %1925 = vmatprep.subr.bf16.mxu0 0
        %1926 = vmatpush2.bf16.msra.mxu0 0
        %1927 = vmatprep.subr.bf16.mxu0 0
        %1928 = vmatpush2.bf16.msra.mxu0 0
        %1929 = vmatprep.subr.bf16.mxu0 0
        %1930 = vmatpush2.bf16.msra.mxu0 0
        %1931 = vmatprep.subr.bf16.mxu0 0
        %1932 = vmatpush2.bf16.msra.mxu0 0
        %1933 = vmatprep.subr.bf16.mxu0 0
        %1934 = vmatpush2.bf16.msra.mxu0 0
        %1935 = vmatprep.subr.bf16.mxu0 0
        %1936 = vmatpush2.bf16.msra.mxu0 0
        %1937 = vmatprep.subr.bf16.mxu0 0
        %1938 = vmatpush2.bf16.msra.mxu0 0
        %1939 = vmatprep.mubr.bf16.mxu0 0
        %1940 = vmatmul.mubr.bf16.gmra.mxu0 %v1896
        %v1941 = vpop.f32.mrf.mxu0
        %v1942 = vadd.f32 0.0, %v1941
        %v1943 = vpop.f32.mrf.mxu0
        %v1944 = vadd.f32 0.0, %v1943
        %v1945 = vpop.f32.mrf.mxu0
        %v1946 = vpop.f32.mrf.mxu0
        %1947 = vdwg.mxu0
        %1948 = vmatprep.subr.bf16.mxu0 0
        %1949 = vmatpush1.bf16.msra.mxu0 0
        %1950 = vmatprep.subr.bf16.mxu0 0
        %1951 = vmatpush1.bf16.msra.mxu0 0
        %1952 = vmatprep.subr.bf16.mxu0 0
        %1953 = vmatpush1.bf16.msra.mxu0 0
        %1954 = vmatprep.subr.bf16.mxu0 0
        %1955 = vmatpush1.bf16.msra.mxu0 0
        %1956 = vmatprep.subr.bf16.mxu0 0
        %1957 = vmatpush1.bf16.msra.mxu0 0
        %1958 = vmatprep.subr.bf16.mxu0 0
        %1959 = vmatpush1.bf16.msra.mxu0 0
        %1960 = vmatprep.subr.bf16.mxu0 0
        %1961 = vmatpush1.bf16.msra.mxu0 0
        %1962 = vmatprep.subr.bf16.mxu0 0
        %1963 = vmatpush1.bf16.msra.mxu0 %v1905
        %1964 = vmatprep.subr.bf16.mxu0 0
        %1965 = vmatpush2.bf16.msra.mxu0 0
        %1966 = vmatprep.subr.bf16.mxu0 0
        %1967 = vmatpush2.bf16.msra.mxu0 0
        %1968 = vmatprep.subr.bf16.mxu0 0
        %1969 = vmatpush2.bf16.msra.mxu0 0
        %1970 = vmatprep.subr.bf16.mxu0 0
        %1971 = vmatpush2.bf16.msra.mxu0 0
        %1972 = vmatprep.subr.bf16.mxu0 0
        %1973 = vmatpush2.bf16.msra.mxu0 0
        %1974 = vmatprep.subr.bf16.mxu0 0
        %1975 = vmatpush2.bf16.msra.mxu0 0
        %1976 = vmatprep.subr.bf16.mxu0 0
        %1977 = vmatpush2.bf16.msra.mxu0 0
        %1978 = vmatprep.subr.bf16.mxu0 0
        %1979 = vmatpush2.bf16.msra.mxu0 0
        %1980 = vmatprep.mubr.bf16.mxu0 0
        %1981 = vmatmul.mubr.bf16.gmra.mxu0 %v1896
        %v1982 = vpop.f32.mrf.mxu0
        %v1983 = vadd.f32 0.0, %v1982
        %v1984 = vpop.f32.mrf.mxu0
        %v1985 = vpop.f32.mrf.mxu0
        %v1986 = vpop.f32.mrf.mxu0
        %1987 = vdwg.mxu0
        %v1988 = vadd.f32 %v1879, %v1942
        %v1989 = vadd.f32 %v1880, %v1944
        %v1990 = vadd.f32 %v1881, %v1983
        %s1991 = scalar_lea.vmem %s2, 10
        %v1992 = vld [vmem:[%s1991] sm:$0x3]
        %1993 = vrot.lane.b32.xlu0 %v1456, 108
        %v1994 = vpop.permute.xlu0 %1993
        %1995 = vrot.lane.b32.xlu0 %v1457, 108
        %v1996 = vpop.permute.xlu0 %1995
        %1997 = vrot.lane.b32.xlu0 %v1458, 108
        %v1998 = vpop.permute.xlu0 %1997
        %1999 = vrot.lane.b32.xlu0 %v1459, 108
        %v2000 = vpop.permute.xlu0 %1999
        %v2001 = vsel %vm769, %v1994, %v1996
        %v2002 = vsel %vm769, %v1996, %v1998
        %v2003 = vsel %vm769, %v1998, %v2000
        %v2005 = vsel %vm241, %v1992, 0
        %v2008 = vsel %vm245, %v2001, 0
        %v2011 = vsel %vm245, %v2002, 0
        %v2014 = vsel %vm245, %v2003, 0
        %2016 = vmatprep.subr.bf16.mxu0 0
        %2017 = vmatpush1.bf16.msra.mxu0 0
        %2018 = vmatprep.subr.bf16.mxu0 0
        %2019 = vmatpush1.bf16.msra.mxu0 0
        %2020 = vmatprep.subr.bf16.mxu0 0
        %2021 = vmatpush1.bf16.msra.mxu0 0
        %2022 = vmatprep.subr.bf16.mxu0 0
        %2023 = vmatpush1.bf16.msra.mxu0 0
        %2024 = vmatprep.subr.bf16.mxu0 0
        %2025 = vmatpush1.bf16.msra.mxu0 0
        %2026 = vmatprep.subr.bf16.mxu0 0
        %2027 = vmatpush1.bf16.msra.mxu0 0
        %2028 = vmatprep.subr.bf16.mxu0 0
        %2029 = vmatpush1.bf16.msra.mxu0 0
        %2030 = vmatprep.subr.bf16.mxu0 %v2011
        %2031 = vmatpush1.bf16.msra.mxu0 %v2008
        %2032 = vmatprep.subr.bf16.mxu0 0
        %2033 = vmatpush2.bf16.msra.mxu0 0
        %2034 = vmatprep.subr.bf16.mxu0 0
        %2035 = vmatpush2.bf16.msra.mxu0 0
        %2036 = vmatprep.subr.bf16.mxu0 0
        %2037 = vmatpush2.bf16.msra.mxu0 0
        %2038 = vmatprep.subr.bf16.mxu0 0
        %2039 = vmatpush2.bf16.msra.mxu0 0
        %2040 = vmatprep.subr.bf16.mxu0 0
        %2041 = vmatpush2.bf16.msra.mxu0 0
        %2042 = vmatprep.subr.bf16.mxu0 0
        %2043 = vmatpush2.bf16.msra.mxu0 0
        %2044 = vmatprep.subr.bf16.mxu0 0
        %2045 = vmatpush2.bf16.msra.mxu0 0
        %2046 = vmatprep.subr.bf16.mxu0 0
        %2047 = vmatpush2.bf16.msra.mxu0 0
        %2048 = vmatprep.mubr.bf16.mxu0 0
        %2049 = vmatmul.mubr.bf16.gmra.mxu0 %v2005
        %v2050 = vpop.f32.mrf.mxu0
        %v2051 = vadd.f32 0.0, %v2050
        %v2052 = vpop.f32.mrf.mxu0
        %v2053 = vadd.f32 0.0, %v2052
        %v2054 = vpop.f32.mrf.mxu0
        %v2055 = vpop.f32.mrf.mxu0
        %2056 = vdwg.mxu0
        %2057 = vmatprep.subr.bf16.mxu0 0
        %2058 = vmatpush1.bf16.msra.mxu0 0
        %2059 = vmatprep.subr.bf16.mxu0 0
        %2060 = vmatpush1.bf16.msra.mxu0 0
        %2061 = vmatprep.subr.bf16.mxu0 0
        %2062 = vmatpush1.bf16.msra.mxu0 0
        %2063 = vmatprep.subr.bf16.mxu0 0
        %2064 = vmatpush1.bf16.msra.mxu0 0
        %2065 = vmatprep.subr.bf16.mxu0 0
        %2066 = vmatpush1.bf16.msra.mxu0 0
        %2067 = vmatprep.subr.bf16.mxu0 0
        %2068 = vmatpush1.bf16.msra.mxu0 0
        %2069 = vmatprep.subr.bf16.mxu0 0
        %2070 = vmatpush1.bf16.msra.mxu0 0
        %2071 = vmatprep.subr.bf16.mxu0 0
        %2072 = vmatpush1.bf16.msra.mxu0 %v2014
        %2073 = vmatprep.subr.bf16.mxu0 0
        %2074 = vmatpush2.bf16.msra.mxu0 0
        %2075 = vmatprep.subr.bf16.mxu0 0
        %2076 = vmatpush2.bf16.msra.mxu0 0
        %2077 = vmatprep.subr.bf16.mxu0 0
        %2078 = vmatpush2.bf16.msra.mxu0 0
        %2079 = vmatprep.subr.bf16.mxu0 0
        %2080 = vmatpush2.bf16.msra.mxu0 0
        %2081 = vmatprep.subr.bf16.mxu0 0
        %2082 = vmatpush2.bf16.msra.mxu0 0
        %2083 = vmatprep.subr.bf16.mxu0 0
        %2084 = vmatpush2.bf16.msra.mxu0 0
        %2085 = vmatprep.subr.bf16.mxu0 0
        %2086 = vmatpush2.bf16.msra.mxu0 0
        %2087 = vmatprep.subr.bf16.mxu0 0
        %2088 = vmatpush2.bf16.msra.mxu0 0
        %2089 = vmatprep.mubr.bf16.mxu0 0
        %2090 = vmatmul.mubr.bf16.gmra.mxu0 %v2005
        %v2091 = vpop.f32.mrf.mxu0
        %v2092 = vadd.f32 0.0, %v2091
        %v2093 = vpop.f32.mrf.mxu0
        %v2094 = vpop.f32.mrf.mxu0
        %v2095 = vpop.f32.mrf.mxu0
        %2096 = vdwg.mxu0
        %v2097 = vadd.f32 %v1988, %v2051
        %v2098 = vadd.f32 %v1989, %v2053
        %v2099 = vadd.f32 %v1990, %v2092
        %s2100 = scalar_lea.vmem %s2, 12
        %v2101 = vld [vmem:[%s2100] sm:$0x3]
        %2102 = vrot.lane.b32.xlu0 %v1456, 92
        %v2103 = vpop.permute.xlu0 %2102
        %2104 = vrot.lane.b32.xlu0 %v1457, 92
        %v2105 = vpop.permute.xlu0 %2104
        %2106 = vrot.lane.b32.xlu0 %v1458, 92
        %v2107 = vpop.permute.xlu0 %2106
        %2108 = vrot.lane.b32.xlu0 %v1459, 92
        %v2109 = vpop.permute.xlu0 %2108
        %v2110 = vsel %vm879, %v2103, %v2105
        %v2111 = vsel %vm879, %v2105, %v2107
        %v2112 = vsel %vm879, %v2107, %v2109
        %v2114 = vsel %vm241, %v2101, 0
        %v2117 = vsel %vm245, %v2110, 0
        %v2120 = vsel %vm245, %v2111, 0
        %v2123 = vsel %vm245, %v2112, 0
        %2125 = vmatprep.subr.bf16.mxu0 0
        %2126 = vmatpush1.bf16.msra.mxu0 0
        %2127 = vmatprep.subr.bf16.mxu0 0
        %2128 = vmatpush1.bf16.msra.mxu0 0
        %2129 = vmatprep.subr.bf16.mxu0 0
        %2130 = vmatpush1.bf16.msra.mxu0 0
        %2131 = vmatprep.subr.bf16.mxu0 0
        %2132 = vmatpush1.bf16.msra.mxu0 0
        %2133 = vmatprep.subr.bf16.mxu0 0
        %2134 = vmatpush1.bf16.msra.mxu0 0
        %2135 = vmatprep.subr.bf16.mxu0 0
        %2136 = vmatpush1.bf16.msra.mxu0 0
        %2137 = vmatprep.subr.bf16.mxu0 0
        %2138 = vmatpush1.bf16.msra.mxu0 0
        %2139 = vmatprep.subr.bf16.mxu0 %v2120
        %2140 = vmatpush1.bf16.msra.mxu0 %v2117
        %2141 = vmatprep.subr.bf16.mxu0 0
        %2142 = vmatpush2.bf16.msra.mxu0 0
        %2143 = vmatprep.subr.bf16.mxu0 0
        %2144 = vmatpush2.bf16.msra.mxu0 0
        %2145 = vmatprep.subr.bf16.mxu0 0
        %2146 = vmatpush2.bf16.msra.mxu0 0
        %2147 = vmatprep.subr.bf16.mxu0 0
        %2148 = vmatpush2.bf16.msra.mxu0 0
        %2149 = vmatprep.subr.bf16.mxu0 0
        %2150 = vmatpush2.bf16.msra.mxu0 0
        %2151 = vmatprep.subr.bf16.mxu0 0
        %2152 = vmatpush2.bf16.msra.mxu0 0
        %2153 = vmatprep.subr.bf16.mxu0 0
        %2154 = vmatpush2.bf16.msra.mxu0 0
        %2155 = vmatprep.subr.bf16.mxu0 0
        %2156 = vmatpush2.bf16.msra.mxu0 0
        %2157 = vmatprep.mubr.bf16.mxu0 0
        %2158 = vmatmul.mubr.bf16.gmra.mxu0 %v2114
        %v2159 = vpop.f32.mrf.mxu0
        %v2160 = vadd.f32 0.0, %v2159
        %v2161 = vpop.f32.mrf.mxu0
        %v2162 = vadd.f32 0.0, %v2161
        %v2163 = vpop.f32.mrf.mxu0
        %v2164 = vpop.f32.mrf.mxu0
        %2165 = vdwg.mxu0
        %2166 = vmatprep.subr.bf16.mxu0 0
        %2167 = vmatpush1.bf16.msra.mxu0 0
        %2168 = vmatprep.subr.bf16.mxu0 0
        %2169 = vmatpush1.bf16.msra.mxu0 0
        %2170 = vmatprep.subr.bf16.mxu0 0
        %2171 = vmatpush1.bf16.msra.mxu0 0
        %2172 = vmatprep.subr.bf16.mxu0 0
        %2173 = vmatpush1.bf16.msra.mxu0 0
        %2174 = vmatprep.subr.bf16.mxu0 0
        %2175 = vmatpush1.bf16.msra.mxu0 0
        %2176 = vmatprep.subr.bf16.mxu0 0
        %2177 = vmatpush1.bf16.msra.mxu0 0
        %2178 = vmatprep.subr.bf16.mxu0 0
        %2179 = vmatpush1.bf16.msra.mxu0 0
        %2180 = vmatprep.subr.bf16.mxu0 0
        %2181 = vmatpush1.bf16.msra.mxu0 %v2123
        %2182 = vmatprep.subr.bf16.mxu0 0
        %2183 = vmatpush2.bf16.msra.mxu0 0
        %2184 = vmatprep.subr.bf16.mxu0 0
        %2185 = vmatpush2.bf16.msra.mxu0 0
        %2186 = vmatprep.subr.bf16.mxu0 0
        %2187 = vmatpush2.bf16.msra.mxu0 0
        %2188 = vmatprep.subr.bf16.mxu0 0
        %2189 = vmatpush2.bf16.msra.mxu0 0
        %2190 = vmatprep.subr.bf16.mxu0 0
        %2191 = vmatpush2.bf16.msra.mxu0 0
        %2192 = vmatprep.subr.bf16.mxu0 0
        %2193 = vmatpush2.bf16.msra.mxu0 0
        %2194 = vmatprep.subr.bf16.mxu0 0
        %2195 = vmatpush2.bf16.msra.mxu0 0
        %2196 = vmatprep.subr.bf16.mxu0 0
        %2197 = vmatpush2.bf16.msra.mxu0 0
        %2198 = vmatprep.mubr.bf16.mxu0 0
        %2199 = vmatmul.mubr.bf16.gmra.mxu0 %v2114
        %v2200 = vpop.f32.mrf.mxu0
        %v2201 = vadd.f32 0.0, %v2200
        %v2202 = vpop.f32.mrf.mxu0
        %v2203 = vpop.f32.mrf.mxu0
        %v2204 = vpop.f32.mrf.mxu0
        %2205 = vdwg.mxu0
        %v2206 = vadd.f32 %v2097, %v2160
        %v2207 = vadd.f32 %v2098, %v2162
        %v2208 = vadd.f32 %v2099, %v2201
        %s2209 = scalar_lea.vmem %s2, 14
        %v2210 = vld [vmem:[%s2209] sm:$0x3]
        %2211 = vrot.lane.b32.xlu0 %v1456, 91
        %v2212 = vpop.permute.xlu0 %2211
        %2213 = vrot.lane.b32.xlu0 %v1457, 91
        %v2214 = vpop.permute.xlu0 %2213
        %2215 = vrot.lane.b32.xlu0 %v1458, 91
        %v2216 = vpop.permute.xlu0 %2215
        %2217 = vrot.lane.b32.xlu0 %v1459, 91
        %v2218 = vpop.permute.xlu0 %2217
        %v2219 = vsel %vm989, %v2212, %v2214
        %v2220 = vsel %vm989, %v2214, %v2216
        %v2221 = vsel %vm989, %v2216, %v2218
        %v2223 = vsel %vm241, %v2210, 0
        %v2226 = vsel %vm245, %v2219, 0
        %v2229 = vsel %vm245, %v2220, 0
        %v2232 = vsel %vm245, %v2221, 0
        %2234 = vmatprep.subr.bf16.mxu0 0
        %2235 = vmatpush1.bf16.msra.mxu0 0
        %2236 = vmatprep.subr.bf16.mxu0 0
        %2237 = vmatpush1.bf16.msra.mxu0 0
        %2238 = vmatprep.subr.bf16.mxu0 0
        %2239 = vmatpush1.bf16.msra.mxu0 0
        %2240 = vmatprep.subr.bf16.mxu0 0
        %2241 = vmatpush1.bf16.msra.mxu0 0
        %2242 = vmatprep.subr.bf16.mxu0 0
        %2243 = vmatpush1.bf16.msra.mxu0 0
        %2244 = vmatprep.subr.bf16.mxu0 0
        %2245 = vmatpush1.bf16.msra.mxu0 0
        %2246 = vmatprep.subr.bf16.mxu0 0
        %2247 = vmatpush1.bf16.msra.mxu0 0
        %2248 = vmatprep.subr.bf16.mxu0 %v2229
        %2249 = vmatpush1.bf16.msra.mxu0 %v2226
        %2250 = vmatprep.subr.bf16.mxu0 0
        %2251 = vmatpush2.bf16.msra.mxu0 0
        %2252 = vmatprep.subr.bf16.mxu0 0
        %2253 = vmatpush2.bf16.msra.mxu0 0
        %2254 = vmatprep.subr.bf16.mxu0 0
        %2255 = vmatpush2.bf16.msra.mxu0 0
        %2256 = vmatprep.subr.bf16.mxu0 0
        %2257 = vmatpush2.bf16.msra.mxu0 0
        %2258 = vmatprep.subr.bf16.mxu0 0
        %2259 = vmatpush2.bf16.msra.mxu0 0
        %2260 = vmatprep.subr.bf16.mxu0 0
        %2261 = vmatpush2.bf16.msra.mxu0 0
        %2262 = vmatprep.subr.bf16.mxu0 0
        %2263 = vmatpush2.bf16.msra.mxu0 0
        %2264 = vmatprep.subr.bf16.mxu0 0
        %2265 = vmatpush2.bf16.msra.mxu0 0
        %2266 = vmatprep.mubr.bf16.mxu0 0
        %2267 = vmatmul.mubr.bf16.gmra.mxu0 %v2223
        %v2268 = vpop.f32.mrf.mxu0
        %v2269 = vadd.f32 0.0, %v2268
        %v2270 = vpop.f32.mrf.mxu0
        %v2271 = vadd.f32 0.0, %v2270
        %v2272 = vpop.f32.mrf.mxu0
        %v2273 = vpop.f32.mrf.mxu0
        %2274 = vdwg.mxu0
        %2275 = vmatprep.subr.bf16.mxu0 0
        %2276 = vmatpush1.bf16.msra.mxu0 0
        %2277 = vmatprep.subr.bf16.mxu0 0
        %2278 = vmatpush1.bf16.msra.mxu0 0
        %2279 = vmatprep.subr.bf16.mxu0 0
        %2280 = vmatpush1.bf16.msra.mxu0 0
        %2281 = vmatprep.subr.bf16.mxu0 0
        %2282 = vmatpush1.bf16.msra.mxu0 0
        %2283 = vmatprep.subr.bf16.mxu0 0
        %2284 = vmatpush1.bf16.msra.mxu0 0
        %2285 = vmatprep.subr.bf16.mxu0 0
        %2286 = vmatpush1.bf16.msra.mxu0 0
        %2287 = vmatprep.subr.bf16.mxu0 0
        %2288 = vmatpush1.bf16.msra.mxu0 0
        %2289 = vmatprep.subr.bf16.mxu0 0
        %2290 = vmatpush1.bf16.msra.mxu0 %v2232
        %2291 = vmatprep.subr.bf16.mxu0 0
        %2292 = vmatpush2.bf16.msra.mxu0 0
        %2293 = vmatprep.subr.bf16.mxu0 0
        %2294 = vmatpush2.bf16.msra.mxu0 0
        %2295 = vmatprep.subr.bf16.mxu0 0
        %2296 = vmatpush2.bf16.msra.mxu0 0
        %2297 = vmatprep.subr.bf16.mxu0 0
        %2298 = vmatpush2.bf16.msra.mxu0 0
        %2299 = vmatprep.subr.bf16.mxu0 0
        %2300 = vmatpush2.bf16.msra.mxu0 0
        %2301 = vmatprep.subr.bf16.mxu0 0
        %2302 = vmatpush2.bf16.msra.mxu0 0
        %2303 = vmatprep.subr.bf16.mxu0 0
        %2304 = vmatpush2.bf16.msra.mxu0 0
        %2305 = vmatprep.subr.bf16.mxu0 0
        %2306 = vmatpush2.bf16.msra.mxu0 0
        %2307 = vmatprep.mubr.bf16.mxu0 0
        %2308 = vmatmul.mubr.bf16.gmra.mxu0 %v2223
        %v2309 = vpop.f32.mrf.mxu0
        %v2310 = vadd.f32 0.0, %v2309
        %v2311 = vpop.f32.mrf.mxu0
        %v2312 = vpop.f32.mrf.mxu0
        %v2313 = vpop.f32.mrf.mxu0
        %2314 = vdwg.mxu0
        %v2315 = vadd.f32 %v2206, %v2269
        %v2316 = vadd.f32 %v2207, %v2271
        %v2317 = vadd.f32 %v2208, %v2310
        %s2318 = scalar_lea.vmem %s2, 16
        %v2319 = vld [vmem:[%s2318] sm:$0x3]
        %2320 = vrot.lane.b32.xlu0 %v1456, 90
        %v2321 = vpop.permute.xlu0 %2320
        %2322 = vrot.lane.b32.xlu0 %v1457, 90
        %v2323 = vpop.permute.xlu0 %2322
        %2324 = vrot.lane.b32.xlu0 %v1458, 90
        %v2325 = vpop.permute.xlu0 %2324
        %2326 = vrot.lane.b32.xlu0 %v1459, 90
        %v2327 = vpop.permute.xlu0 %2326
        %v2328 = vsel %vm1099, %v2321, %v2323
        %v2329 = vsel %vm1099, %v2323, %v2325
        %v2330 = vsel %vm1099, %v2325, %v2327
        %v2332 = vsel %vm241, %v2319, 0
        %v2335 = vsel %vm245, %v2328, 0
        %v2338 = vsel %vm245, %v2329, 0
        %v2341 = vsel %vm245, %v2330, 0
        %2343 = vmatprep.subr.bf16.mxu0 0
        %2344 = vmatpush1.bf16.msra.mxu0 0
        %2345 = vmatprep.subr.bf16.mxu0 0
        %2346 = vmatpush1.bf16.msra.mxu0 0
        %2347 = vmatprep.subr.bf16.mxu0 0
        %2348 = vmatpush1.bf16.msra.mxu0 0
        %2349 = vmatprep.subr.bf16.mxu0 0
        %2350 = vmatpush1.bf16.msra.mxu0 0
        %2351 = vmatprep.subr.bf16.mxu0 0
        %2352 = vmatpush1.bf16.msra.mxu0 0
        %2353 = vmatprep.subr.bf16.mxu0 0
        %2354 = vmatpush1.bf16.msra.mxu0 0
        %2355 = vmatprep.subr.bf16.mxu0 0
        %2356 = vmatpush1.bf16.msra.mxu0 0
        %2357 = vmatprep.subr.bf16.mxu0 %v2338
        %2358 = vmatpush1.bf16.msra.mxu0 %v2335
        %2359 = vmatprep.subr.bf16.mxu0 0
        %2360 = vmatpush2.bf16.msra.mxu0 0
        %2361 = vmatprep.subr.bf16.mxu0 0
        %2362 = vmatpush2.bf16.msra.mxu0 0
        %2363 = vmatprep.subr.bf16.mxu0 0
        %2364 = vmatpush2.bf16.msra.mxu0 0
        %2365 = vmatprep.subr.bf16.mxu0 0
        %2366 = vmatpush2.bf16.msra.mxu0 0
        %2367 = vmatprep.subr.bf16.mxu0 0
        %2368 = vmatpush2.bf16.msra.mxu0 0
        %2369 = vmatprep.subr.bf16.mxu0 0
        %2370 = vmatpush2.bf16.msra.mxu0 0
        %2371 = vmatprep.subr.bf16.mxu0 0
        %2372 = vmatpush2.bf16.msra.mxu0 0
        %2373 = vmatprep.subr.bf16.mxu0 0
        %2374 = vmatpush2.bf16.msra.mxu0 0
        %2375 = vmatprep.mubr.bf16.mxu0 0
        %2376 = vmatmul.mubr.bf16.gmra.mxu0 %v2332
        %v2377 = vpop.f32.mrf.mxu0
        %v2378 = vadd.f32 0.0, %v2377
        %v2379 = vpop.f32.mrf.mxu0
        %v2380 = vadd.f32 0.0, %v2379
        %v2381 = vpop.f32.mrf.mxu0
        %v2382 = vpop.f32.mrf.mxu0
        %2383 = vdwg.mxu0
        %2384 = vmatprep.subr.bf16.mxu0 0
        %2385 = vmatpush1.bf16.msra.mxu0 0
        %2386 = vmatprep.subr.bf16.mxu0 0
        %2387 = vmatpush1.bf16.msra.mxu0 0
        %2388 = vmatprep.subr.bf16.mxu0 0
        %2389 = vmatpush1.bf16.msra.mxu0 0
        %2390 = vmatprep.subr.bf16.mxu0 0
        %2391 = vmatpush1.bf16.msra.mxu0 0
        %2392 = vmatprep.subr.bf16.mxu0 0
        %2393 = vmatpush1.bf16.msra.mxu0 0
        %2394 = vmatprep.subr.bf16.mxu0 0
        %2395 = vmatpush1.bf16.msra.mxu0 0
        %2396 = vmatprep.subr.bf16.mxu0 0
        %2397 = vmatpush1.bf16.msra.mxu0 0
        %2398 = vmatprep.subr.bf16.mxu0 0
        %2399 = vmatpush1.bf16.msra.mxu0 %v2341
        %2400 = vmatprep.subr.bf16.mxu0 0
        %2401 = vmatpush2.bf16.msra.mxu0 0
        %2402 = vmatprep.subr.bf16.mxu0 0
        %2403 = vmatpush2.bf16.msra.mxu0 0
        %2404 = vmatprep.subr.bf16.mxu0 0
        %2405 = vmatpush2.bf16.msra.mxu0 0
        %2406 = vmatprep.subr.bf16.mxu0 0
        %2407 = vmatpush2.bf16.msra.mxu0 0
        %2408 = vmatprep.subr.bf16.mxu0 0
        %2409 = vmatpush2.bf16.msra.mxu0 0
        %2410 = vmatprep.subr.bf16.mxu0 0
        %2411 = vmatpush2.bf16.msra.mxu0 0
        %2412 = vmatprep.subr.bf16.mxu0 0
        %2413 = vmatpush2.bf16.msra.mxu0 0
        %2414 = vmatprep.subr.bf16.mxu0 0
        %2415 = vmatpush2.bf16.msra.mxu0 0
        %2416 = vmatprep.mubr.bf16.mxu0 0
        %2417 = vmatmul.mubr.bf16.gmra.mxu0 %v2332
        %v2418 = vpop.f32.mrf.mxu0
        %v2419 = vadd.f32 0.0, %v2418
        %v2420 = vpop.f32.mrf.mxu0
        %v2421 = vpop.f32.mrf.mxu0
        %v2422 = vpop.f32.mrf.mxu0
        %2423 = vdwg.mxu0
        %v2424 = vadd.f32 %v2315, %v2378
        %v2425 = vadd.f32 %v2316, %v2380
        %v2426 = vadd.f32 %v2317, %v2419
        %v2427 = vsel %vm1212, %v2424, 0.0
        %v2428 = vsel %vm1213, %v2425, 0.0
        %v2429 = vsel %vm1214, %v2426, 0.0
        %v2430 = vsel %vm1218, %v2427, 0.0
        %v2431 = vsel %vm1218, %v2428, 0.0
        %v2432 = vadd.f32 %v2430, %v2431
        %v2433 = vsel %vm1218, %v2429, 0.0
        %v2434 = vadd.f32 %v2432, %v2433
        %2435 = vadd.xlane.f32.xlu0 %v2434
        %v2436 = vpop.xlane.xlu0 %2435
        %v2437 = vmul.f32 %v2436, 0.00390625
        %v2438 = vmul.f32 %v2427, %v2427
        %v2439 = vmul.f32 %v2428, %v2428
        %v2440 = vmul.f32 %v2429, %v2429
        %v2441 = vsel %vm1218, %v2438, 0.0
        %v2442 = vsel %vm1218, %v2439, 0.0
        %v2443 = vadd.f32 %v2441, %v2442
        %v2444 = vsel %vm1218, %v2440, 0.0
        %v2445 = vadd.f32 %v2443, %v2444
        %2446 = vadd.xlane.f32.xlu0 %v2445
        %v2447 = vpop.xlane.xlu0 %2446
        %v2448 = vmul.f32 %v2447, 0.00390625
        %v2449 = vmul.f32 %v2437, %v2437
        %v2450 = vsub.f32 %v2448, %v2449
        %v2451 = vmax.f32 %v2450, 0.0
        %v2452 = vsub.f32 %v2427, %v2437
        %v2453 = vsub.f32 %v2428, %v2437
        %v2454 = vsub.f32 %v2429, %v2437
        %v2455 = vadd.f32 %v2451, 1e-05
        %v2456 = vrsqrt.pop %v2455
        %v2457 = vmul.f32 %v2452, %v2456
        %v2458 = vmul.f32 %v2453, %v2456
        %v2459 = vmul.f32 %v2454, %v2456
        %2463 = vrot.lane.b32.xlu0 %v2457, 19
        %v2464 = vpop.permute.xlu0 %2463
        %2465 = vrot.lane.b32.xlu0 %v2458, 19
        %v2466 = vpop.permute.xlu0 %2465
        %2467 = vrot.lane.b32.xlu0 %v2459, 19
        %v2468 = vpop.permute.xlu0 %2467
        %v2469 = vsel %vm1261, %v2464, %v2466
        %v2470 = vsel %vm1261, %v2466, %v2468
        %v2475 = vadd.f32 %v197, %v2464
        %v2476 = vadd.f32 %v214, %v2469
        %v2477 = vadd.f32 %v217, %v2470
        %v2478 = vadd.f32 %v2468, 0.0
        %v2483 = vcombine.low %v2475, %v2476
        %v2484 = vcombine.low %v2477, %v2478
        %2485 = vrot.lane.b32.xlu0 %v2483, 109
        %v2486 = vpop.permute.xlu0 %2485
        %2487 = vrot.lane.b32.xlu0 %v2484, 109
        %v2488 = vpop.permute.xlu0 %2487
        %v2489 = vrot.slane %v2486, 4
        %v2490 = vrot.slane %v2488, 4
        %v2491 = vsel %vm1218, %v2489, %v2490
        %vm2492 = vcmask 891904
        %v2493 = vsel %vm2492, %v2486, %v2491
        %v2494 = vsel %vm2492, %v2488, %v2490
        %2497 = vst [vmem:[%s190] sm:$0xff] %v2493
        %2498 = vst [vmem:[%s190 + $0x8] sm:$0xf] %v2494
        %s2499 = sand.u32 %s115, 1
        %s2500 = scalar_lea.sflag [#allocation3], %s2499
        %s2501 = sand.u32 %s115, 1
        %s2502 = smul.addr %s2501, 12
        %s2503 = scalar_lea.vmem [#allocation2], %s2502
        // Predicated region
        $region37: #{tpu_custom_call.1} parent=35 // pred_check
          %p2504 = pneg %p125
        $region38: #{tpu_custom_call.1} parent=35 // pred_check_branch
          %2506 = sbr.rel (%p2504) target = $region40
        $region39: #{tpu_custom_call.1} parent=35 // pred_region
          %s2508 = ssub.s32 192, 192
          %2509 = vsyncadd %s2500, %s2508
          %s2510 = smul.addr %s18, 3
          %s2511 = smul.addr %s2510, 64
          %s2512 = scalar_lea.hbm %s4, %s2511
          %s2514 = sshll.u32 %s2503, 4
          %s2515 = int_to_ptr.vmem [resolvable:$true] %s2514
          %2517 = dma.vmem_to_hbm [thread:$0]  %s2515, 192, %s2512, %s2500
        $region40: #{tpu_custom_call.1} parent=35 // pred_fallthru
          _
      $region36: #{tpu_custom_call.1} parent=5 // pred_fallthru
        _
      %p2518 = scmp.le.s32.totalorder 2, %s13
      // Predicated region
      $region41: #{tpu_custom_call.1} parent=5 // pred_check
        %p2519 = pneg %p2518
      $region42: #{tpu_custom_call.1} parent=5 // pred_check_branch
        %2521 = sbr.rel (%p2519) target = $region44
      $region43: #{tpu_custom_call.1} parent=5 // pred_region
        %s2522 = ssub.s32 %s13, 2
        // Predicated region
        $region45: #{tpu_custom_call.1} parent=43 // pred_check
          %p2523 = pneg %p131
        $region46: #{tpu_custom_call.1} parent=43 // pred_check_branch
          %2525 = sbr.rel (%p2523) target = $region48
        $region47: #{tpu_custom_call.1} parent=43 // pred_region
          %s2526 = sand.u32 %s116, 1
          %s2527 = scalar_lea.sflag [#allocation3], %s2526
          %s2528 = sand.u32 %s116, 1
          %s2529 = smul.addr %s2528, 12
          %s2530 = scalar_lea.vmem [#allocation2], %s2529
          %2531 = dma.done %s2527, 192
        $region48: #{tpu_custom_call.1} parent=43 // pred_fallthru
          _
      $region44: #{tpu_custom_call.1} parent=5 // pred_fallthru
        _
    $region6: #{tpu_custom_call.1} parent=1 // loop_footer
      %s17 = sadd.s32 1, %s13
    $region7: #{tpu_custom_call.1} parent=1 // loop_footer_branch
      %12 = sbr.rel target = $region3
    $region8: #{tpu_custom_call.1} parent=1 // loop_exit
      _
    %2532 = vsyncpa [#allocation3], 1
    %s2533 = scalar_lea.sflag [#allocation3], 1
    %2534 = vsyncpa %s2533, 1

</llo_original>
